<compile_context>
chip_gen: v6e
topology: v6e:2x2x1
jax: 0.10.0
libtpu: 0.0.40
codegen_flags: <defaults>
</compile_context>

<pallas_src>
import math
import jax
import jax.numpy as jnp
import numpy as np
from jax.experimental import pallas as pl
from jax.experimental.pallas import tpu as pltpu

# ---- problem sizes (constructor args of VAEC) -------------------------------
B = 8        # batch (cells)
G = 128      # n_input (genes)
C = 4        # n_labels
H = 32       # n_hidden
L = 8        # n_latent
BN_EPS = 1e-3
EPS = 1e-8
OUT_W = 128  # lane-dense output width

# ---- numerics helpers (pure jnp; used both inside the kernel and in the reference) ----
_LANCZOS_G = 7.0
_LANCZOS = (0.99999999999980993, 676.5203681218851, -1259.1392167224028,
            771.32342877765313, -176.61502916214059, 12.507343278686905,
            -0.13857109526572012, 9.9843695780195716e-6, 1.5056327351493116e-7)


def _lgamma_pos(z):
    # Lanczos approximation of log-Gamma, valid for z > 0 (all arguments here are > 0).
    zm1 = z - 1.0
    acc = jnp.full_like(zm1, _LANCZOS[0])
    for i in range(1, len(_LANCZOS)):
        acc = acc + _LANCZOS[i] / (zm1 + float(i))
    t = zm1 + _LANCZOS_G + 0.5
    return 0.5 * math.log(2.0 * math.pi) + (zm1 + 0.5) * jnp.log(t) - t + jnp.log(acc)


def _softplus(t):
    return jnp.maximum(t, 0.0) + jnp.log(1.0 + jnp.exp(-jnp.abs(t)))


def _softmax_last(t):
    t = t - jnp.max(t, axis=-1, keepdims=True)
    e = jnp.exp(t)
    return e / jnp.sum(e, axis=-1, keepdims=True)


# ---- faithful per-label math (reference path only) --------------------------
def _per_label_math(x, ys, eps_z, eps_l, llm, llv, px_r, p, dot):
    xs_ = jnp.log(1.0 + x)                                   # log_variational

    h = dot(xs_, p['w_zex']) + dot(ys, p['w_zey']) + p['b_ze']
    h = jnp.maximum(h * p['bn_ze_s'] + p['bn_ze_b'], 0.0)
    qz_m = dot(h, p['w_zm']) + p['b_zm']
    qz_v = jnp.exp(dot(h, p['w_zv']) + p['b_zv'])
    z = qz_m + jnp.sqrt(qz_v) * eps_z

    hl = dot(xs_, p['w_le']) + p['b_le']
    hl = jnp.maximum(hl * p['bn_le_s'] + p['bn_le_b'], 0.0)
    ql_m = dot(hl, p['w_lm']) + p['b_lm']
    ql_v = jnp.exp(dot(hl, p['w_lv']) + p['b_lv'])
    library = ql_m + jnp.sqrt(ql_v) * eps_l

    hd = dot(z, p['w_dz']) + dot(ys, p['w_dy']) + p['b_d']
    hd = jnp.maximum(hd * p['bn_d_s'] + p['bn_d_b'], 0.0)
    px_scale = _softmax_last(dot(hd, p['w_sc']) + p['b_sc'])
    px_dropout = dot(hd, p['w_dr']) + p['b_dr']
    px_rate = jnp.exp(library) * px_scale

    theta = jnp.exp(px_r)
    mu, pi = px_rate, px_dropout
    sp_neg_pi = _softplus(-pi)
    log_t_eps = jnp.log(theta + EPS)
    log_tm_eps = jnp.log(theta + mu + EPS)
    case_zero = _softplus(-pi + theta * log_t_eps - theta * log_tm_eps) - sp_neg_pi
    case_nz = (-pi - sp_neg_pi
               + theta * log_t_eps - theta * log_tm_eps
               + x * jnp.log(mu + EPS) - x * log_tm_eps
               + _lgamma_pos(x + theta) - _lgamma_pos(theta) - _lgamma_pos(x + 1.0))
    res = jnp.where(x < EPS, case_zero, case_nz)
    reconst = -jnp.sum(res, axis=-1, keepdims=True)

    kl_z = jnp.sum(0.5 * (qz_v + qz_m * qz_m - 1.0 - jnp.log(qz_v)),
                   axis=-1, keepdims=True)
    vr = ql_v / llv
    t1 = (ql_m - llm) ** 2 / llv
    kl_l = jnp.sum(0.5 * (vr + t1 - 1.0 - jnp.log(vr)), axis=-1, keepdims=True)
    return reconst, kl_z + kl_l


def _classifier_mix_math(x, rc_t, kl_t, log_prior, p, dot):
    x_ = jnp.log(1.0 + x)
    h = dot(x_, p['w_c1']) + p['b_c1']
    h = jnp.maximum(h * p['bn_c_s'] + p['bn_c_b'], 0.0)
    probs = _softmax_last(dot(h, p['w_c2']) + p['b_c2'])
    reconst = jnp.sum(rc_t * probs, axis=-1, keepdims=True)
    kl_mix = jnp.sum(kl_t * probs, axis=-1, keepdims=True)
    log_probs = jnp.log(jnp.maximum(probs, 1e-7))
    kl_cat = jnp.sum(probs * (log_probs - log_prior), axis=-1, keepdims=True)
    return reconst, kl_mix + kl_cat


# ---- fused Pallas kernel -----------------------------------------------------
def _vaec_fused_kernel(x_ref, eps_z_ref, eps_l_ref, llm_ref, llv_ref, px_r_ref,
                       w_g3h_ref, b_3h_ref, bias_zey_ref,
                       w_zh_ref, b_zh_ref, w_lh_ref, b_lh_ref, w_ch_ref, b_ch_ref,
                       w_dz_ref, bias_d_ref, w_dec_ref, b_dec_ref,
                       out_ref):
    f32 = jnp.float32
    bf16 = jnp.bfloat16
    Bc, Gc = x_ref.shape
    CB, Hh = bias_zey_ref.shape
    Cc = CB // Bc
    Ll = eps_z_ref.shape[1]

    def dot(a, b):
        return jnp.dot(a.astype(bf16), b, preferred_element_type=f32)

    # ---------------- label-invariant prologue ----------------
    x = x_ref[...]                                   # (B, G)
    xs_ = jnp.log(1.0 + x)                           # log_variational

    # shared G->(3H) matmul: [z-enc pre-act | l-enc hidden | classifier hidden]
    hs = dot(xs_, w_g3h_ref[...]) + b_3h_ref[...]    # (B, 3H)
    pre_z = hs[:, :Hh]                               # per-label bias added below
    h_l = jnp.maximum(hs[:, Hh:2 * Hh], 0.0)
    h_c = jnp.maximum(hs[:, 2 * Hh:], 0.0)

    # l-encoder heads (label-invariant)
    lh = dot(h_l, w_lh_ref[...]) + b_lh_ref[...]     # (B, 2) = [ql_m | log ql_v]
    ql_m = lh[:, 0:1]
    ql_v = jnp.exp(lh[:, 1:2])
    ql_sd = jnp.sqrt(ql_v)
    llm = llm_ref[...]
    llv = llv_ref[...]
    vr = ql_v / llv
    kl_l = 0.5 * (vr + (ql_m - llm) ** 2 / llv - 1.0 - jnp.log(vr))   # (B, 1)

    # classifier probs (label-invariant)
    logits = dot(h_c, w_ch_ref[...]) + b_ch_ref[...]                  # (B, C)
    logits = logits - jnp.max(logits, axis=-1, keepdims=True)
    pe = jnp.exp(logits)
    probs = pe * pl.reciprocal(jnp.sum(pe, axis=-1, keepdims=True), approx=True)

    # ZINB label-invariant pieces (hoisted; lgamma terms computed ONCE)
    theta = jnp.exp(px_r_ref[...])                   # (1, G)
    log_t_eps = jnp.log(theta + EPS)
    t_logt = theta * log_t_eps
    lg_const = (_lgamma_pos(x + theta) - _lgamma_pos(theta)
                - _lgamma_pos(x + 1.0))              # (B, G)
    zero_mask = x < EPS                              # (B, G)

    # ---------------- per-label encoder/decoder, batched over C*B rows ----------------
    # z-encoder hidden: one-hot matmul replaced by per-label fused bias rows.
    hz = jnp.maximum(jnp.tile(pre_z, (Cc, 1)) + bias_zey_ref[...], 0.0)   # (CB, H)
    zz = dot(hz, w_zh_ref[...]) + b_zh_ref[...]                           # (CB, 2L)
    qz_m = zz[:, :Ll]
    qz_logv = zz[:, Ll:]
    qz_v = jnp.exp(qz_logv)
    z = qz_m + jnp.sqrt(qz_v) * eps_z_ref[...]                            # (CB, L)
    kl_z = 0.5 * jnp.sum(qz_v + qz_m * qz_m - 1.0 - qz_logv,
                         axis=-1, keepdims=True)                          # (CB, 1)

    # decoder, batched over labels (32-row MXU tiles, lane-dense (H, 2G) weight)
    hd = jnp.maximum(dot(z, w_dz_ref[...]) + bias_d_ref[...], 0.0)        # (CB, H)
    dec = dot(hd, w_dec_ref[...]) + b_dec_ref[...]                        # (CB, 2G)
    sc = dec[:, :Gc]
    pi_all = dec[:, Gc:]
    sc = sc - jnp.max(sc, axis=-1, keepdims=True)
    se = jnp.exp(sc)
    px_scale = se * pl.reciprocal(jnp.sum(se, axis=-1, keepdims=True), approx=True)

    # ---------------- ZINB + classifier mixing, per label on 8-row aligned views -------
    eps_l = eps_l_ref[...]                                                # (CB, 1)
    mixed_rc = jnp.zeros((Bc, 1), f32)
    mixed_kl = jnp.zeros((Bc, 1), f32)
    for c in range(Cc):                                                   # unrolled, C=4
        r0 = c * Bc
        pi = pi_all[r0:r0 + Bc, :]                                        # (B, G) views
        library = ql_m + ql_sd * eps_l[r0:r0 + Bc, :]                     # (B, 1)
        mu = jnp.exp(library) * px_scale[r0:r0 + Bc, :]                   # (B, G)

        sp_neg_pi = _softplus(-pi)
        log_tm = jnp.log(theta + mu + EPS)
        t_term = t_logt - theta * log_tm
        case_zero = _softplus(-pi + t_term) - sp_neg_pi
        case_nz = (-pi - sp_neg_pi + t_term
                   + x * jnp.log(mu + EPS) - x * log_tm + lg_const)
        res = jnp.where(zero_mask, case_zero, case_nz)
        reconst_c = -jnp.sum(res, axis=-1, keepdims=True)                 # (B, 1)

        pc = probs[:, c:c + 1]
        mixed_rc = mixed_rc + pc * reconst_c
        mixed_kl = mixed_kl + pc * (kl_z[r0:r0 + Bc, :] + kl_l)

    # categorical KL vs uniform prior y_prior = 1/C
    log_probs = jnp.log(jnp.maximum(probs, 1e-7))
    kl_cat = jnp.sum(probs * (log_probs + math.log(Cc)), axis=-1, keepdims=True)
    mixed_kl = mixed_kl + kl_cat

    # lane-dense output: single (B, 128) unmasked store; col 0 = reconst, col 1 = kl
    col = jax.lax.broadcasted_iota(jnp.int32, (Bc, OUT_W), 1)
    out_ref[...] = (jnp.where(col == 0, mixed_rc, 0.0)
                    + jnp.where(col == 1, mixed_kl, 0.0))


# ---- wrapper -----------------------------------------------------------------
def vaec_forward(params, x, local_l_mean, local_l_var, eps_z, eps_l):
    Bc, Gc = x.shape
    f32, bf16 = jnp.float32, jnp.bfloat16

    # Fold eval-mode BatchNorm1d (running_mean=0, running_var=1) into linear weights/biases.
    def fold(w, b, s, sb):
        return w * s, b * s + sb

    w_zex_f, b_ze_f = fold(params['w_zex'], params['b_ze'], params['bn_ze_s'], params['bn_ze_b'])
    w_zey_f = params['w_zey'] * params['bn_ze_s']
    w_le_f, b_le_f = fold(params['w_le'], params['b_le'], params['bn_le_s'], params['bn_le_b'])
    w_c1_f, b_c1_f = fold(params['w_c1'], params['b_c1'], params['bn_c_s'], params['bn_c_b'])
    w_dz_f, b_d_f = fold(params['w_dz'], params['b_d'], params['bn_d_s'], params['bn_d_b'])
    w_dy_f = params['w_dy'] * params['bn_d_s']

    # Packed / concatenated weights (bf16 operands, f32 biases & accumulation).
    w_g3h = jnp.concatenate([w_zex_f, w_le_f, w_c1_f], axis=1).astype(bf16)        # (G, 3H)
    b_3h = jnp.concatenate([b_ze_f, b_le_f, b_c1_f], axis=1).astype(f32)           # (1, 3H)
    bias_zey = jnp.repeat(w_zey_f, Bc, axis=0).astype(f32)                         # (C*B, H)
    w_zh = jnp.concatenate([params['w_zm'], params['w_zv']], axis=1).astype(bf16)  # (H, 2L)
    b_zh = jnp.concatenate([params['b_zm'], params['b_zv']], axis=1).astype(f32)
    w_lh = jnp.concatenate([params['w_lm'], params['w_lv']], axis=1).astype(bf16)  # (H, 2)
    b_lh = jnp.concatenate([params['b_lm'], params['b_lv']], axis=1).astype(f32)
    w_ch = params['w_c2'].astype(bf16)                                             # (H, C)
    b_ch = params['b_c2'].astype(f32)
    w_dz = w_dz_f.astype(bf16)                                                     # (L, H)
    bias_d = jnp.repeat(b_d_f + w_dy_f, Bc, axis=0).astype(f32)                    # (C*B, H)
    w_dec = jnp.concatenate([params['w_sc'], params['w_dr']], axis=1).astype(bf16) # (H, 2G)
    b_dec = jnp.concatenate([params['b_sc'], params['b_dr']], axis=1).astype(f32)  # (1, 2G)

    eps_z_flat = eps_z.reshape(C * Bc, L)      # label-major rows: c*B + b
    eps_l_flat = eps_l.reshape(C * Bc, 1)

    in_arrays = [x, eps_z_flat, eps_l_flat, local_l_mean, local_l_var, params['px_r'],
                 w_g3h, b_3h, bias_zey, w_zh, b_zh, w_lh, b_lh, w_ch, b_ch,
                 w_dz, bias_d, w_dec, b_dec]

    def full_spec(a):
        nd = a.ndim
        return pl.BlockSpec(a.shape, lambda i, _n=nd: (0,) * _n)

    out = pl.pallas_call(
        _vaec_fused_kernel,
        grid=(1,),
        in_specs=[full_spec(a) for a in in_arrays],
        out_specs=pl.BlockSpec((Bc, OUT_W), lambda i: (0, 0)),
        out_shape=jax.ShapeDtypeStruct((Bc, OUT_W), jnp.float32),
        compiler_params=pltpu.CompilerParams(dimension_semantics=("arbitrary",)),
    )(*in_arrays)

    return out[:, 0], out[:, 1]


# ---- pure-JAX reference (faithful math, HIGHEST-precision dots) ---------------
def vaec_forward_reference(params, x, local_l_mean, local_l_var, eps_z, eps_l):
    dot = lambda a, b: jnp.dot(a, b, precision=jax.lax.Precision.HIGHEST,
                               preferred_element_type=jnp.float32)
    eye = jnp.eye(C, dtype=jnp.float32)
    rc_rows, kl_rows = [], []
    for c in range(C):
        ys = jnp.broadcast_to(eye[c][None, :], (x.shape[0], C))
        r, k = _per_label_math(x, ys, eps_z[c], eps_l[c], local_l_mean, local_l_var,
                               params['px_r'], params, dot)
        rc_rows.append(r[:, 0])
        kl_rows.append(k[:, 0])
    rc_t = jnp.stack(rc_rows, axis=1)
    kl_t = jnp.stack(kl_rows, axis=1)
    log_prior = jnp.full((1, C), -math.log(C), jnp.float32)
    r, k = _classifier_mix_math(x, rc_t, kl_t, log_prior, params, dot)
    return r[:, 0], k[:, 0]


# ---- deterministic synthetic parameter init -----------------------------------
def init_params(key):
    def nxt():
        nonlocal key
        key, sub = jax.random.split(key)
        return sub

    def lin(n_in, n_out):
        w = jax.random.normal(nxt(), (n_in, n_out), jnp.float32) * (1.0 / math.sqrt(n_in))
        b = jax.random.normal(nxt(), (1, n_out), jnp.float32) * 0.01
        return w, b

    # BatchNorm1d init: gamma=1, beta=0, running_mean=0, running_var=1 (folded affine)
    bn_s = jnp.full((1, H), 1.0 / math.sqrt(1.0 + BN_EPS), jnp.float32)
    bn_b = jnp.zeros((1, H), jnp.float32)

    p = {}
    w_ze, p['b_ze'] = lin(G + C, H)          # z_encoder FCLayers Linear(G+C, H)
    p['w_zex'], p['w_zey'] = w_ze[:G], w_ze[G:]
    p['bn_ze_s'], p['bn_ze_b'] = bn_s, bn_b
    p['w_zm'], p['b_zm'] = lin(H, L)         # mean_encoder
    p['w_zv'], p['b_zv'] = lin(H, L)         # var_encoder
    p['w_le'], p['b_le'] = lin(G, H)         # l_encoder FCLayers Linear(G, H)
    p['bn_le_s'], p['bn_le_b'] = bn_s, bn_b
    p['w_lm'], p['b_lm'] = lin(H, 1)
    p['w_lv'], p['b_lv'] = lin(H, 1)
    w_d, p['b_d'] = lin(L + C, H)            # decoder px_decoder Linear(L+C, H)
    p['w_dz'], p['w_dy'] = w_d[:L], w_d[L:]
    p['bn_d_s'], p['bn_d_b'] = bn_s, bn_b
    p['w_sc'], p['b_sc'] = lin(H, G)         # px_scale_decoder
    p['w_dr'], p['b_dr'] = lin(H, G)         # px_dropout_decoder
    p['w_c1'], p['b_c1'] = lin(G, H)         # classifier FCLayers
    p['bn_c_s'], p['bn_c_b'] = bn_s, bn_b
    p['w_c2'], p['b_c2'] = lin(H, C)         # classifier head
    p['px_r'] = jax.random.normal(nxt(), (1, G), jnp.float32)   # dispersion='gene'
    return p


if __name__ == "__main__":
    key = jax.random.PRNGKey(0)
    k_p, k_x, k_ez, k_el, k_lv = jax.random.split(key, 5)

    params = init_params(k_p)
    x = jax.random.poisson(k_x, 2.0, (B, G)).astype(jnp.float32)           # count data
    local_l_mean = jnp.log(jnp.sum(x, axis=1, keepdims=True) + 1.0)        # (B,1)
    local_l_var = jax.random.uniform(k_lv, (B, 1), jnp.float32, 0.5, 1.5)  # (B,1)
    eps_z = jax.random.normal(k_ez, (C, B, L), jnp.float32)                # reparam noise
    eps_l = jax.random.normal(k_el, (C, B, 1), jnp.float32)

    fwd = jax.jit(vaec_forward)
    reconst, kld = fwd(params, x, local_l_mean, local_l_var, eps_z, eps_l)
    jax.block_until_ready((reconst, kld))

    r_ref, k_ref = vaec_forward_reference(params, x, local_l_mean, local_l_var, eps_z, eps_l)
    r_ref, k_ref = jax.block_until_ready((r_ref, k_ref))

    assert reconst.shape == (B,) and kld.shape == (B,)
    assert np.all(np.isfinite(np.asarray(reconst))) and np.all(np.isfinite(np.asarray(kld)))
    np.testing.assert_allclose(np.asarray(reconst), np.asarray(r_ref), rtol=5e-2, atol=5e-2)
    np.testing.assert_allclose(np.asarray(kld), np.asarray(k_ref), rtol=5e-2, atol=5e-2)

    print("KERNEL_OK")
</pallas_src>

<mosaic_0001>
module attributes {stable_mosaic.version = 11 : i64} {
  func.func @_vaec_fused_kernel(%arg0: i32, %arg1: memref<8x128xf32, #tpu.memory_space<vmem>>, %arg2: memref<32x8xf32, #tpu.memory_space<vmem>>, %arg3: memref<32x1xf32, #tpu.memory_space<vmem>>, %arg4: memref<8x1xf32, #tpu.memory_space<vmem>>, %arg5: memref<8x1xf32, #tpu.memory_space<vmem>>, %arg6: memref<1x128xf32, #tpu.memory_space<vmem>>, %arg7: memref<128x96xbf16, #tpu.memory_space<vmem>>, %arg8: memref<1x96xf32, #tpu.memory_space<vmem>>, %arg9: memref<32x32xf32, #tpu.memory_space<vmem>>, %arg10: memref<32x16xbf16, #tpu.memory_space<vmem>>, %arg11: memref<1x16xf32, #tpu.memory_space<vmem>>, %arg12: memref<32x2xbf16, #tpu.memory_space<vmem>>, %arg13: memref<1x2xf32, #tpu.memory_space<vmem>>, %arg14: memref<32x4xbf16, #tpu.memory_space<vmem>>, %arg15: memref<1x4xf32, #tpu.memory_space<vmem>>, %arg16: memref<8x32xbf16, #tpu.memory_space<vmem>>, %arg17: memref<32x32xf32, #tpu.memory_space<vmem>>, %arg18: memref<32x256xbf16, #tpu.memory_space<vmem>>, %arg19: memref<1x256xf32, #tpu.memory_space<vmem>>, %arg20: memref<8x128xf32, #tpu.memory_space<vmem>>) attributes {dimension_semantics = [#tpu.dimension_semantics<arbitrary>], iteration_bounds = array<i64: 1>, scalar_prefetch = 0 : i64, scratch_operands = 0 : i64, tpu.core_type = #tpu.core_type<tc>, window_params = [{pipeline_mode = #tpu.pipeline_mode<synchronous>, transform_indices = @transform_0, window_bounds = array<i64: 8, 128>}, {pipeline_mode = #tpu.pipeline_mode<synchronous>, transform_indices = @transform_1, window_bounds = array<i64: 32, 8>}, {pipeline_mode = #tpu.pipeline_mode<synchronous>, transform_indices = @transform_2, window_bounds = array<i64: 32, 1>}, {pipeline_mode = #tpu.pipeline_mode<synchronous>, transform_indices = @transform_3, window_bounds = array<i64: 8, 1>}, {pipeline_mode = #tpu.pipeline_mode<synchronous>, transform_indices = @transform_4, window_bounds = array<i64: 8, 1>}, {pipeline_mode = #tpu.pipeline_mode<synchronous>, transform_indices = @transform_5, window_bounds = array<i64: 1, 128>}, {pipeline_mode = #tpu.pipeline_mode<synchronous>, transform_indices = @transform_6, window_bounds = array<i64: 128, 96>}, {pipeline_mode = #tpu.pipeline_mode<synchronous>, transform_indices = @transform_7, window_bounds = array<i64: 1, 96>}, {pipeline_mode = #tpu.pipeline_mode<synchronous>, transform_indices = @transform_8, window_bounds = array<i64: 32, 32>}, {pipeline_mode = #tpu.pipeline_mode<synchronous>, transform_indices = @transform_9, window_bounds = array<i64: 32, 16>}, {pipeline_mode = #tpu.pipeline_mode<synchronous>, transform_indices = @transform_10, window_bounds = array<i64: 1, 16>}, {pipeline_mode = #tpu.pipeline_mode<synchronous>, transform_indices = @transform_11, window_bounds = array<i64: 32, 2>}, {pipeline_mode = #tpu.pipeline_mode<synchronous>, transform_indices = @transform_12, window_bounds = array<i64: 1, 2>}, {pipeline_mode = #tpu.pipeline_mode<synchronous>, transform_indices = @transform_13, window_bounds = array<i64: 32, 4>}, {pipeline_mode = #tpu.pipeline_mode<synchronous>, transform_indices = @transform_14, window_bounds = array<i64: 1, 4>}, {pipeline_mode = #tpu.pipeline_mode<synchronous>, transform_indices = @transform_15, window_bounds = array<i64: 8, 32>}, {pipeline_mode = #tpu.pipeline_mode<synchronous>, transform_indices = @transform_16, window_bounds = array<i64: 32, 32>}, {pipeline_mode = #tpu.pipeline_mode<synchronous>, transform_indices = @transform_17, window_bounds = array<i64: 32, 256>}, {pipeline_mode = #tpu.pipeline_mode<synchronous>, transform_indices = @transform_18, window_bounds = array<i64: 1, 256>}, {pipeline_mode = #tpu.pipeline_mode<synchronous>, transform_indices = @transform_19, window_bounds = array<i64: 8, 128>}]} {
    %c0 = arith.constant 0 : index
    %c0_0 = arith.constant 0 : index
    %0 = vector.load %arg1[%c0, %c0_0] : memref<8x128xf32, #tpu.memory_space<vmem>>, vector<8x128xf32>
    %cst = arith.constant 1.000000e+00 : f32
    %1 = vector.broadcast %cst : f32 to vector<8x128xf32>
    %2 = arith.addf %1, %0 : vector<8x128xf32>
    %3 = math.log %2 : vector<8x128xf32>
    %c0_1 = arith.constant 0 : index
    %c0_2 = arith.constant 0 : index
    %4 = vector.load %arg7[%c0_1, %c0_2] : memref<128x96xbf16, #tpu.memory_space<vmem>>, vector<128x96xbf16>
    %5 = arith.truncf %3 : vector<8x128xf32> to vector<8x128xbf16>
    %cst_3 = arith.constant dense<0.000000e+00> : vector<8x96xf32>
    %6 = tpu.matmul %5, %4, %cst_3 {dimension_numbers = #tpu.dot_dimension_numbers<[1], [0], [0], [1], [0, 0, 1, 1], [], []>} : vector<8x128xbf16>, vector<128x96xbf16>, vector<8x96xf32> -> vector<8x96xf32>
    %c0_4 = arith.constant 0 : index
    %c0_5 = arith.constant 0 : index
    %7 = vector.load %arg8[%c0_4, %c0_5] : memref<1x96xf32, #tpu.memory_space<vmem>>, vector<1x96xf32>
    %8 = vector.broadcast %7 : vector<1x96xf32> to vector<8x96xf32>
    %9 = arith.addf %6, %8 : vector<8x96xf32>
    %10 = vector.extract_strided_slice %9 {offsets = [0, 0], sizes = [8, 32], strides = [1, 1]} : vector<8x96xf32> to vector<8x32xf32>
    %11 = vector.extract_strided_slice %9 {offsets = [0, 32], sizes = [8, 32], strides = [1, 1]} : vector<8x96xf32> to vector<8x32xf32>
    %cst_6 = arith.constant 0.000000e+00 : f32
    %12 = vector.broadcast %cst_6 : f32 to vector<8x32xf32>
    %13 = arith.maximumf %11, %12 : vector<8x32xf32>
    %14 = vector.extract_strided_slice %9 {offsets = [0, 64], sizes = [8, 32], strides = [1, 1]} : vector<8x96xf32> to vector<8x32xf32>
    %cst_7 = arith.constant 0.000000e+00 : f32
    %15 = vector.broadcast %cst_7 : f32 to vector<8x32xf32>
    %16 = arith.maximumf %14, %15 : vector<8x32xf32>
    %c0_8 = arith.constant 0 : index
    %c0_9 = arith.constant 0 : index
    %17 = vector.load %arg12[%c0_8, %c0_9] : memref<32x2xbf16, #tpu.memory_space<vmem>>, vector<32x2xbf16>
    %18 = arith.truncf %13 : vector<8x32xf32> to vector<8x32xbf16>
    %cst_10 = arith.constant dense<0.000000e+00> : vector<8x2xf32>
    %19 = tpu.matmul %18, %17, %cst_10 {dimension_numbers = #tpu.dot_dimension_numbers<[1], [0], [0], [1], [0, 0, 1, 1], [], []>} : vector<8x32xbf16>, vector<32x2xbf16>, vector<8x2xf32> -> vector<8x2xf32>
    %c0_11 = arith.constant 0 : index
    %c0_12 = arith.constant 0 : index
    %20 = vector.load %arg13[%c0_11, %c0_12] : memref<1x2xf32, #tpu.memory_space<vmem>>, vector<1x2xf32>
    %21 = vector.broadcast %20 : vector<1x2xf32> to vector<8x2xf32>
    %22 = arith.addf %19, %21 : vector<8x2xf32>
    %23 = vector.extract_strided_slice %22 {offsets = [0, 0], sizes = [8, 1], strides = [1, 1]} : vector<8x2xf32> to vector<8x1xf32>
    %24 = vector.extract_strided_slice %22 {offsets = [0, 1], sizes = [8, 1], strides = [1, 1]} : vector<8x2xf32> to vector<8x1xf32>
    %25 = math.exp %24 : vector<8x1xf32>
    %26 = math.sqrt %25 : vector<8x1xf32>
    %c0_13 = arith.constant 0 : index
    %c0_14 = arith.constant 0 : index
    %27 = vector.load %arg4[%c0_13, %c0_14] : memref<8x1xf32, #tpu.memory_space<vmem>>, vector<8x1xf32>
    %c0_15 = arith.constant 0 : index
    %c0_16 = arith.constant 0 : index
    %28 = vector.load %arg5[%c0_15, %c0_16] : memref<8x1xf32, #tpu.memory_space<vmem>>, vector<8x1xf32>
    %29 = arith.divf %25, %28 : vector<8x1xf32>
    %30 = arith.subf %23, %27 : vector<8x1xf32>
    %31 = arith.mulf %30, %30 : vector<8x1xf32>
    %32 = arith.divf %31, %28 : vector<8x1xf32>
    %33 = arith.addf %29, %32 : vector<8x1xf32>
    %cst_17 = arith.constant 1.000000e+00 : f32
    %34 = vector.broadcast %cst_17 : f32 to vector<8x1xf32>
    %35 = arith.subf %33, %34 : vector<8x1xf32>
    %36 = math.log %29 : vector<8x1xf32>
    %37 = arith.subf %35, %36 : vector<8x1xf32>
    %cst_18 = arith.constant 5.000000e-01 : f32
    %38 = vector.broadcast %cst_18 : f32 to vector<8x1xf32>
    %39 = arith.mulf %38, %37 : vector<8x1xf32>
    %c0_19 = arith.constant 0 : index
    %c0_20 = arith.constant 0 : index
    %40 = vector.load %arg14[%c0_19, %c0_20] : memref<32x4xbf16, #tpu.memory_space<vmem>>, vector<32x4xbf16>
    %41 = arith.truncf %16 : vector<8x32xf32> to vector<8x32xbf16>
    %cst_21 = arith.constant dense<0.000000e+00> : vector<8x4xf32>
    %42 = tpu.matmul %41, %40, %cst_21 {dimension_numbers = #tpu.dot_dimension_numbers<[1], [0], [0], [1], [0, 0, 1, 1], [], []>} : vector<8x32xbf16>, vector<32x4xbf16>, vector<8x4xf32> -> vector<8x4xf32>
    %c0_22 = arith.constant 0 : index
    %c0_23 = arith.constant 0 : index
    %43 = vector.load %arg15[%c0_22, %c0_23] : memref<1x4xf32, #tpu.memory_space<vmem>>, vector<1x4xf32>
    %44 = vector.broadcast %43 : vector<1x4xf32> to vector<8x4xf32>
    %45 = arith.addf %42, %44 : vector<8x4xf32>
    %cst_24 = arith.constant dense<0xFF800000> : vector<8xf32>
    %46 = vector.multi_reduction <maximumf>, %45, %cst_24 [1] : vector<8x4xf32> to vector<8xf32>
    %47 = vector.shape_cast %46 : vector<8xf32> to vector<8x1xf32>
    %48 = vector.broadcast %47 : vector<8x1xf32> to vector<8x4xf32>
    %49 = arith.subf %45, %48 : vector<8x4xf32>
    %50 = math.exp %49 : vector<8x4xf32>
    %cst_25 = arith.constant dense<0.000000e+00> : vector<8xf32>
    %51 = vector.multi_reduction <add>, %50, %cst_25 [1] : vector<8x4xf32> to vector<8xf32>
    %52 = vector.shape_cast %51 : vector<8xf32> to vector<8x1xf32>
    %53 = tpu.reciprocal %52 {approx = true} : vector<8x1xf32> -> vector<8x1xf32>
    %54 = vector.broadcast %53 : vector<8x1xf32> to vector<8x4xf32>
    %55 = arith.mulf %50, %54 : vector<8x4xf32>
    %c0_26 = arith.constant 0 : index
    %c0_27 = arith.constant 0 : index
    %56 = vector.load %arg6[%c0_26, %c0_27] : memref<1x128xf32, #tpu.memory_space<vmem>>, vector<1x128xf32>
    %57 = math.exp %56 : vector<1x128xf32>
    %cst_28 = arith.constant 9.99999993E-9 : f32
    %58 = vector.broadcast %cst_28 : f32 to vector<1x128xf32>
    %59 = arith.addf %57, %58 : vector<1x128xf32>
    %60 = math.log %59 : vector<1x128xf32>
    %61 = arith.mulf %57, %60 : vector<1x128xf32>
    %62 = vector.broadcast %57 : vector<1x128xf32> to vector<8x128xf32>
    %63 = arith.addf %0, %62 : vector<8x128xf32>
    %cst_29 = arith.constant 1.000000e+00 : f32
    %64 = vector.broadcast %cst_29 : f32 to vector<8x128xf32>
    %65 = arith.subf %63, %64 : vector<8x128xf32>
    %cst_30 = arith.constant 1.000000e+00 : f32
    %66 = vector.broadcast %cst_30 : f32 to vector<8x128xf32>
    %cst_31 = arith.constant 1.000000e+00 : f32
    %67 = vector.broadcast %cst_31 : f32 to vector<8x128xf32>
    %68 = arith.addf %65, %67 : vector<8x128xf32>
    %cst_32 = arith.constant 676.520386 : f32
    %69 = vector.broadcast %cst_32 : f32 to vector<8x128xf32>
    %70 = arith.divf %69, %68 : vector<8x128xf32>
    %71 = arith.addf %66, %70 : vector<8x128xf32>
    %cst_33 = arith.constant 2.000000e+00 : f32
    %72 = vector.broadcast %cst_33 : f32 to vector<8x128xf32>
    %73 = arith.addf %65, %72 : vector<8x128xf32>
    %cst_34 = arith.constant -1259.13916 : f32
    %74 = vector.broadcast %cst_34 : f32 to vector<8x128xf32>
    %75 = arith.divf %74, %73 : vector<8x128xf32>
    %76 = arith.addf %71, %75 : vector<8x128xf32>
    %cst_35 = arith.constant 3.000000e+00 : f32
    %77 = vector.broadcast %cst_35 : f32 to vector<8x128xf32>
    %78 = arith.addf %65, %77 : vector<8x128xf32>
    %cst_36 = arith.constant 771.323425 : f32
    %79 = vector.broadcast %cst_36 : f32 to vector<8x128xf32>
    %80 = arith.divf %79, %78 : vector<8x128xf32>
    %81 = arith.addf %76, %80 : vector<8x128xf32>
    %cst_37 = arith.constant 4.000000e+00 : f32
    %82 = vector.broadcast %cst_37 : f32 to vector<8x128xf32>
    %83 = arith.addf %65, %82 : vector<8x128xf32>
    %cst_38 = arith.constant -176.615036 : f32
    %84 = vector.broadcast %cst_38 : f32 to vector<8x128xf32>
    %85 = arith.divf %84, %83 : vector<8x128xf32>
    %86 = arith.addf %81, %85 : vector<8x128xf32>
    %cst_39 = arith.constant 5.000000e+00 : f32
    %87 = vector.broadcast %cst_39 : f32 to vector<8x128xf32>
    %88 = arith.addf %65, %87 : vector<8x128xf32>
    %cst_40 = arith.constant 12.5073433 : f32
    %89 = vector.broadcast %cst_40 : f32 to vector<8x128xf32>
    %90 = arith.divf %89, %88 : vector<8x128xf32>
    %91 = arith.addf %86, %90 : vector<8x128xf32>
    %cst_41 = arith.constant 6.000000e+00 : f32
    %92 = vector.broadcast %cst_41 : f32 to vector<8x128xf32>
    %93 = arith.addf %65, %92 : vector<8x128xf32>
    %cst_42 = arith.constant -0.138571098 : f32
    %94 = vector.broadcast %cst_42 : f32 to vector<8x128xf32>
    %95 = arith.divf %94, %93 : vector<8x128xf32>
    %96 = arith.addf %91, %95 : vector<8x128xf32>
    %cst_43 = arith.constant 7.000000e+00 : f32
    %97 = vector.broadcast %cst_43 : f32 to vector<8x128xf32>
    %98 = arith.addf %65, %97 : vector<8x128xf32>
    %cst_44 = arith.constant 9.98436917E-6 : f32
    %99 = vector.broadcast %cst_44 : f32 to vector<8x128xf32>
    %100 = arith.divf %99, %98 : vector<8x128xf32>
    %101 = arith.addf %96, %100 : vector<8x128xf32>
    %cst_45 = arith.constant 8.000000e+00 : f32
    %102 = vector.broadcast %cst_45 : f32 to vector<8x128xf32>
    %103 = arith.addf %65, %102 : vector<8x128xf32>
    %cst_46 = arith.constant 1.50563267E-7 : f32
    %104 = vector.broadcast %cst_46 : f32 to vector<8x128xf32>
    %105 = arith.divf %104, %103 : vector<8x128xf32>
    %106 = arith.addf %101, %105 : vector<8x128xf32>
    %cst_47 = arith.constant 7.000000e+00 : f32
    %107 = vector.broadcast %cst_47 : f32 to vector<8x128xf32>
    %108 = arith.addf %65, %107 : vector<8x128xf32>
    %cst_48 = arith.constant 5.000000e-01 : f32
    %109 = vector.broadcast %cst_48 : f32 to vector<8x128xf32>
    %110 = arith.addf %108, %109 : vector<8x128xf32>
    %cst_49 = arith.constant 5.000000e-01 : f32
    %111 = vector.broadcast %cst_49 : f32 to vector<8x128xf32>
    %112 = arith.addf %65, %111 : vector<8x128xf32>
    %113 = math.log %110 : vector<8x128xf32>
    %114 = arith.mulf %112, %113 : vector<8x128xf32>
    %cst_50 = arith.constant 0.918938517 : f32
    %115 = vector.broadcast %cst_50 : f32 to vector<8x128xf32>
    %116 = arith.addf %115, %114 : vector<8x128xf32>
    %117 = arith.subf %116, %110 : vector<8x128xf32>
    %118 = math.log %106 : vector<8x128xf32>
    %119 = arith.addf %117, %118 : vector<8x128xf32>
    %cst_51 = arith.constant 1.000000e+00 : f32
    %120 = vector.broadcast %cst_51 : f32 to vector<1x128xf32>
    %121 = arith.subf %57, %120 : vector<1x128xf32>
    %cst_52 = arith.constant 1.000000e+00 : f32
    %122 = vector.broadcast %cst_52 : f32 to vector<1x128xf32>
    %cst_53 = arith.constant 1.000000e+00 : f32
    %123 = vector.broadcast %cst_53 : f32 to vector<1x128xf32>
    %124 = arith.addf %121, %123 : vector<1x128xf32>
    %cst_54 = arith.constant 676.520386 : f32
    %125 = vector.broadcast %cst_54 : f32 to vector<1x128xf32>
    %126 = arith.divf %125, %124 : vector<1x128xf32>
    %127 = arith.addf %122, %126 : vector<1x128xf32>
    %cst_55 = arith.constant 2.000000e+00 : f32
    %128 = vector.broadcast %cst_55 : f32 to vector<1x128xf32>
    %129 = arith.addf %121, %128 : vector<1x128xf32>
    %cst_56 = arith.constant -1259.13916 : f32
    %130 = vector.broadcast %cst_56 : f32 to vector<1x128xf32>
    %131 = arith.divf %130, %129 : vector<1x128xf32>
    %132 = arith.addf %127, %131 : vector<1x128xf32>
    %cst_57 = arith.constant 3.000000e+00 : f32
    %133 = vector.broadcast %cst_57 : f32 to vector<1x128xf32>
    %134 = arith.addf %121, %133 : vector<1x128xf32>
    %cst_58 = arith.constant 771.323425 : f32
    %135 = vector.broadcast %cst_58 : f32 to vector<1x128xf32>
    %136 = arith.divf %135, %134 : vector<1x128xf32>
    %137 = arith.addf %132, %136 : vector<1x128xf32>
    %cst_59 = arith.constant 4.000000e+00 : f32
    %138 = vector.broadcast %cst_59 : f32 to vector<1x128xf32>
    %139 = arith.addf %121, %138 : vector<1x128xf32>
    %cst_60 = arith.constant -176.615036 : f32
    %140 = vector.broadcast %cst_60 : f32 to vector<1x128xf32>
    %141 = arith.divf %140, %139 : vector<1x128xf32>
    %142 = arith.addf %137, %141 : vector<1x128xf32>
    %cst_61 = arith.constant 5.000000e+00 : f32
    %143 = vector.broadcast %cst_61 : f32 to vector<1x128xf32>
    %144 = arith.addf %121, %143 : vector<1x128xf32>
    %cst_62 = arith.constant 12.5073433 : f32
    %145 = vector.broadcast %cst_62 : f32 to vector<1x128xf32>
    %146 = arith.divf %145, %144 : vector<1x128xf32>
    %147 = arith.addf %142, %146 : vector<1x128xf32>
    %cst_63 = arith.constant 6.000000e+00 : f32
    %148 = vector.broadcast %cst_63 : f32 to vector<1x128xf32>
    %149 = arith.addf %121, %148 : vector<1x128xf32>
    %cst_64 = arith.constant -0.138571098 : f32
    %150 = vector.broadcast %cst_64 : f32 to vector<1x128xf32>
    %151 = arith.divf %150, %149 : vector<1x128xf32>
    %152 = arith.addf %147, %151 : vector<1x128xf32>
    %cst_65 = arith.constant 7.000000e+00 : f32
    %153 = vector.broadcast %cst_65 : f32 to vector<1x128xf32>
    %154 = arith.addf %121, %153 : vector<1x128xf32>
    %cst_66 = arith.constant 9.98436917E-6 : f32
    %155 = vector.broadcast %cst_66 : f32 to vector<1x128xf32>
    %156 = arith.divf %155, %154 : vector<1x128xf32>
    %157 = arith.addf %152, %156 : vector<1x128xf32>
    %cst_67 = arith.constant 8.000000e+00 : f32
    %158 = vector.broadcast %cst_67 : f32 to vector<1x128xf32>
    %159 = arith.addf %121, %158 : vector<1x128xf32>
    %cst_68 = arith.constant 1.50563267E-7 : f32
    %160 = vector.broadcast %cst_68 : f32 to vector<1x128xf32>
    %161 = arith.divf %160, %159 : vector<1x128xf32>
    %162 = arith.addf %157, %161 : vector<1x128xf32>
    %cst_69 = arith.constant 7.000000e+00 : f32
    %163 = vector.broadcast %cst_69 : f32 to vector<1x128xf32>
    %164 = arith.addf %121, %163 : vector<1x128xf32>
    %cst_70 = arith.constant 5.000000e-01 : f32
    %165 = vector.broadcast %cst_70 : f32 to vector<1x128xf32>
    %166 = arith.addf %164, %165 : vector<1x128xf32>
    %cst_71 = arith.constant 5.000000e-01 : f32
    %167 = vector.broadcast %cst_71 : f32 to vector<1x128xf32>
    %168 = arith.addf %121, %167 : vector<1x128xf32>
    %169 = math.log %166 : vector<1x128xf32>
    %170 = arith.mulf %168, %169 : vector<1x128xf32>
    %cst_72 = arith.constant 0.918938517 : f32
    %171 = vector.broadcast %cst_72 : f32 to vector<1x128xf32>
    %172 = arith.addf %171, %170 : vector<1x128xf32>
    %173 = arith.subf %172, %166 : vector<1x128xf32>
    %174 = math.log %162 : vector<1x128xf32>
    %175 = arith.addf %173, %174 : vector<1x128xf32>
    %176 = vector.broadcast %175 : vector<1x128xf32> to vector<8x128xf32>
    %177 = arith.subf %119, %176 : vector<8x128xf32>
    %cst_73 = arith.constant 1.000000e+00 : f32
    %178 = vector.broadcast %cst_73 : f32 to vector<8x128xf32>
    %179 = arith.addf %0, %178 : vector<8x128xf32>
    %cst_74 = arith.constant 1.000000e+00 : f32
    %180 = vector.broadcast %cst_74 : f32 to vector<8x128xf32>
    %181 = arith.subf %179, %180 : vector<8x128xf32>
    %cst_75 = arith.constant 1.000000e+00 : f32
    %182 = vector.broadcast %cst_75 : f32 to vector<8x128xf32>
    %cst_76 = arith.constant 1.000000e+00 : f32
    %183 = vector.broadcast %cst_76 : f32 to vector<8x128xf32>
    %184 = arith.addf %181, %183 : vector<8x128xf32>
    %cst_77 = arith.constant 676.520386 : f32
    %185 = vector.broadcast %cst_77 : f32 to vector<8x128xf32>
    %186 = arith.divf %185, %184 : vector<8x128xf32>
    %187 = arith.addf %182, %186 : vector<8x128xf32>
    %cst_78 = arith.constant 2.000000e+00 : f32
    %188 = vector.broadcast %cst_78 : f32 to vector<8x128xf32>
    %189 = arith.addf %181, %188 : vector<8x128xf32>
    %cst_79 = arith.constant -1259.13916 : f32
    %190 = vector.broadcast %cst_79 : f32 to vector<8x128xf32>
    %191 = arith.divf %190, %189 : vector<8x128xf32>
    %192 = arith.addf %187, %191 : vector<8x128xf32>
    %cst_80 = arith.constant 3.000000e+00 : f32
    %193 = vector.broadcast %cst_80 : f32 to vector<8x128xf32>
    %194 = arith.addf %181, %193 : vector<8x128xf32>
    %cst_81 = arith.constant 771.323425 : f32
    %195 = vector.broadcast %cst_81 : f32 to vector<8x128xf32>
    %196 = arith.divf %195, %194 : vector<8x128xf32>
    %197 = arith.addf %192, %196 : vector<8x128xf32>
    %cst_82 = arith.constant 4.000000e+00 : f32
    %198 = vector.broadcast %cst_82 : f32 to vector<8x128xf32>
    %199 = arith.addf %181, %198 : vector<8x128xf32>
    %cst_83 = arith.constant -176.615036 : f32
    %200 = vector.broadcast %cst_83 : f32 to vector<8x128xf32>
    %201 = arith.divf %200, %199 : vector<8x128xf32>
    %202 = arith.addf %197, %201 : vector<8x128xf32>
    %cst_84 = arith.constant 5.000000e+00 : f32
    %203 = vector.broadcast %cst_84 : f32 to vector<8x128xf32>
    %204 = arith.addf %181, %203 : vector<8x128xf32>
    %cst_85 = arith.constant 12.5073433 : f32
    %205 = vector.broadcast %cst_85 : f32 to vector<8x128xf32>
    %206 = arith.divf %205, %204 : vector<8x128xf32>
    %207 = arith.addf %202, %206 : vector<8x128xf32>
    %cst_86 = arith.constant 6.000000e+00 : f32
    %208 = vector.broadcast %cst_86 : f32 to vector<8x128xf32>
    %209 = arith.addf %181, %208 : vector<8x128xf32>
    %cst_87 = arith.constant -0.138571098 : f32
    %210 = vector.broadcast %cst_87 : f32 to vector<8x128xf32>
    %211 = arith.divf %210, %209 : vector<8x128xf32>
    %212 = arith.addf %207, %211 : vector<8x128xf32>
    %cst_88 = arith.constant 7.000000e+00 : f32
    %213 = vector.broadcast %cst_88 : f32 to vector<8x128xf32>
    %214 = arith.addf %181, %213 : vector<8x128xf32>
    %cst_89 = arith.constant 9.98436917E-6 : f32
    %215 = vector.broadcast %cst_89 : f32 to vector<8x128xf32>
    %216 = arith.divf %215, %214 : vector<8x128xf32>
    %217 = arith.addf %212, %216 : vector<8x128xf32>
    %cst_90 = arith.constant 8.000000e+00 : f32
    %218 = vector.broadcast %cst_90 : f32 to vector<8x128xf32>
    %219 = arith.addf %181, %218 : vector<8x128xf32>
    %cst_91 = arith.constant 1.50563267E-7 : f32
    %220 = vector.broadcast %cst_91 : f32 to vector<8x128xf32>
    %221 = arith.divf %220, %219 : vector<8x128xf32>
    %222 = arith.addf %217, %221 : vector<8x128xf32>
    %cst_92 = arith.constant 7.000000e+00 : f32
    %223 = vector.broadcast %cst_92 : f32 to vector<8x128xf32>
    %224 = arith.addf %181, %223 : vector<8x128xf32>
    %cst_93 = arith.constant 5.000000e-01 : f32
    %225 = vector.broadcast %cst_93 : f32 to vector<8x128xf32>
    %226 = arith.addf %224, %225 : vector<8x128xf32>
    %cst_94 = arith.constant 5.000000e-01 : f32
    %227 = vector.broadcast %cst_94 : f32 to vector<8x128xf32>
    %228 = arith.addf %181, %227 : vector<8x128xf32>
    %229 = math.log %226 : vector<8x128xf32>
    %230 = arith.mulf %228, %229 : vector<8x128xf32>
    %cst_95 = arith.constant 0.918938517 : f32
    %231 = vector.broadcast %cst_95 : f32 to vector<8x128xf32>
    %232 = arith.addf %231, %230 : vector<8x128xf32>
    %233 = arith.subf %232, %226 : vector<8x128xf32>
    %234 = math.log %222 : vector<8x128xf32>
    %235 = arith.addf %233, %234 : vector<8x128xf32>
    %236 = arith.subf %177, %235 : vector<8x128xf32>
    %cst_96 = arith.constant 9.99999993E-9 : f32
    %237 = vector.broadcast %cst_96 : f32 to vector<8x128xf32>
    %238 = arith.cmpf olt, %0, %237 : vector<8x128xf32>
    %239 = tpu.concatenate %10, %10, %10, %10 in 0 : vector<8x32xf32>, vector<8x32xf32>, vector<8x32xf32>, vector<8x32xf32> -> vector<32x32xf32>
    %c0_97 = arith.constant 0 : index
    %c0_98 = arith.constant 0 : index
    %240 = vector.load %arg9[%c0_97, %c0_98] : memref<32x32xf32, #tpu.memory_space<vmem>>, vector<32x32xf32>
    %241 = arith.addf %239, %240 : vector<32x32xf32>
    %cst_99 = arith.constant 0.000000e+00 : f32
    %242 = vector.broadcast %cst_99 : f32 to vector<32x32xf32>
    %243 = arith.maximumf %241, %242 : vector<32x32xf32>
    %c0_100 = arith.constant 0 : index
    %c0_101 = arith.constant 0 : index
    %244 = vector.load %arg10[%c0_100, %c0_101] : memref<32x16xbf16, #tpu.memory_space<vmem>>, vector<32x16xbf16>
    %245 = arith.truncf %243 : vector<32x32xf32> to vector<32x32xbf16>
    %cst_102 = arith.constant dense<0.000000e+00> : vector<32x16xf32>
    %246 = tpu.matmul %245, %244, %cst_102 {dimension_numbers = #tpu.dot_dimension_numbers<[1], [0], [0], [1], [0, 0, 1, 1], [], []>} : vector<32x32xbf16>, vector<32x16xbf16>, vector<32x16xf32> -> vector<32x16xf32>
    %c0_103 = arith.constant 0 : index
    %c0_104 = arith.constant 0 : index
    %247 = vector.load %arg11[%c0_103, %c0_104] : memref<1x16xf32, #tpu.memory_space<vmem>>, vector<1x16xf32>
    %248 = vector.broadcast %247 : vector<1x16xf32> to vector<32x16xf32>
    %249 = arith.addf %246, %248 : vector<32x16xf32>
    %250 = vector.extract_strided_slice %249 {offsets = [0, 0], sizes = [32, 8], strides = [1, 1]} : vector<32x16xf32> to vector<32x8xf32>
    %251 = vector.extract_strided_slice %249 {offsets = [0, 8], sizes = [32, 8], strides = [1, 1]} : vector<32x16xf32> to vector<32x8xf32>
    %252 = math.exp %251 : vector<32x8xf32>
    %253 = math.sqrt %252 : vector<32x8xf32>
    %c0_105 = arith.constant 0 : index
    %c0_106 = arith.constant 0 : index
    %254 = vector.load %arg2[%c0_105, %c0_106] : memref<32x8xf32, #tpu.memory_space<vmem>>, vector<32x8xf32>
    %255 = arith.mulf %253, %254 : vector<32x8xf32>
    %256 = arith.addf %250, %255 : vector<32x8xf32>
    %257 = arith.mulf %250, %250 : vector<32x8xf32>
    %258 = arith.addf %252, %257 : vector<32x8xf32>
    %cst_107 = arith.constant 1.000000e+00 : f32
    %259 = vector.broadcast %cst_107 : f32 to vector<32x8xf32>
    %260 = arith.subf %258, %259 : vector<32x8xf32>
    %261 = arith.subf %260, %251 : vector<32x8xf32>
    %cst_108 = arith.constant dense<0.000000e+00> : vector<32xf32>
    %262 = vector.multi_reduction <add>, %261, %cst_108 [1] : vector<32x8xf32> to vector<32xf32>
    %263 = vector.shape_cast %262 : vector<32xf32> to vector<32x1xf32>
    %cst_109 = arith.constant 5.000000e-01 : f32
    %264 = vector.broadcast %cst_109 : f32 to vector<32x1xf32>
    %265 = arith.mulf %264, %263 : vector<32x1xf32>
    %c0_110 = arith.constant 0 : index
    %c0_111 = arith.constant 0 : index
    %266 = vector.load %arg16[%c0_110, %c0_111] : memref<8x32xbf16, #tpu.memory_space<vmem>>, vector<8x32xbf16>
    %267 = arith.truncf %256 : vector<32x8xf32> to vector<32x8xbf16>
    %cst_112 = arith.constant dense<0.000000e+00> : vector<32x32xf32>
    %268 = tpu.matmul %267, %266, %cst_112 {dimension_numbers = #tpu.dot_dimension_numbers<[1], [0], [0], [1], [0, 0, 1, 1], [], []>} : vector<32x8xbf16>, vector<8x32xbf16>, vector<32x32xf32> -> vector<32x32xf32>
    %c0_113 = arith.constant 0 : index
    %c0_114 = arith.constant 0 : index
    %269 = vector.load %arg17[%c0_113, %c0_114] : memref<32x32xf32, #tpu.memory_space<vmem>>, vector<32x32xf32>
    %270 = arith.addf %268, %269 : vector<32x32xf32>
    %cst_115 = arith.constant 0.000000e+00 : f32
    %271 = vector.broadcast %cst_115 : f32 to vector<32x32xf32>
    %272 = arith.maximumf %270, %271 : vector<32x32xf32>
    %c0_116 = arith.constant 0 : index
    %c0_117 = arith.constant 0 : index
    %273 = vector.load %arg18[%c0_116, %c0_117] : memref<32x256xbf16, #tpu.memory_space<vmem>>, vector<32x256xbf16>
    %274 = arith.truncf %272 : vector<32x32xf32> to vector<32x32xbf16>
    %cst_118 = arith.constant dense<0.000000e+00> : vector<32x256xf32>
    %275 = tpu.matmul %274, %273, %cst_118 {dimension_numbers = #tpu.dot_dimension_numbers<[1], [0], [0], [1], [0, 0, 1, 1], [], []>} : vector<32x32xbf16>, vector<32x256xbf16>, vector<32x256xf32> -> vector<32x256xf32>
    %c0_119 = arith.constant 0 : index
    %c0_120 = arith.constant 0 : index
    %276 = vector.load %arg19[%c0_119, %c0_120] : memref<1x256xf32, #tpu.memory_space<vmem>>, vector<1x256xf32>
    %277 = vector.broadcast %276 : vector<1x256xf32> to vector<32x256xf32>
    %278 = arith.addf %275, %277 : vector<32x256xf32>
    %279 = vector.extract_strided_slice %278 {offsets = [0, 0], sizes = [32, 128], strides = [1, 1]} : vector<32x256xf32> to vector<32x128xf32>
    %280 = vector.extract_strided_slice %278 {offsets = [0, 128], sizes = [32, 128], strides = [1, 1]} : vector<32x256xf32> to vector<32x128xf32>
    %cst_121 = arith.constant dense<0xFF800000> : vector<32xf32>
    %281 = vector.multi_reduction <maximumf>, %279, %cst_121 [1] : vector<32x128xf32> to vector<32xf32>
    %282 = vector.shape_cast %281 : vector<32xf32> to vector<32x1xf32>
    %283 = vector.broadcast %282 : vector<32x1xf32> to vector<32x128xf32>
    %284 = arith.subf %279, %283 : vector<32x128xf32>
    %285 = math.exp %284 : vector<32x128xf32>
    %cst_122 = arith.constant dense<0.000000e+00> : vector<32xf32>
    %286 = vector.multi_reduction <add>, %285, %cst_122 [1] : vector<32x128xf32> to vector<32xf32>
    %287 = vector.shape_cast %286 : vector<32xf32> to vector<32x1xf32>
    %288 = tpu.reciprocal %287 {approx = true} : vector<32x1xf32> -> vector<32x1xf32>
    %289 = vector.broadcast %288 : vector<32x1xf32> to vector<32x128xf32>
    %290 = arith.mulf %285, %289 : vector<32x128xf32>
    %c0_123 = arith.constant 0 : index
    %c0_124 = arith.constant 0 : index
    %291 = vector.load %arg3[%c0_123, %c0_124] : memref<32x1xf32, #tpu.memory_space<vmem>>, vector<32x1xf32>
    %cst_125 = arith.constant 0.000000e+00 : f32
    %292 = vector.broadcast %cst_125 : f32 to vector<8x1xf32>
    %cst_126 = arith.constant 0.000000e+00 : f32
    %293 = vector.broadcast %cst_126 : f32 to vector<8x1xf32>
    %294 = vector.extract_strided_slice %280 {offsets = [0, 0], sizes = [8, 128], strides = [1, 1]} : vector<32x128xf32> to vector<8x128xf32>
    %295 = vector.extract_strided_slice %291 {offsets = [0, 0], sizes = [8, 1], strides = [1, 1]} : vector<32x1xf32> to vector<8x1xf32>
    %296 = arith.mulf %26, %295 : vector<8x1xf32>
    %297 = arith.addf %23, %296 : vector<8x1xf32>
    %298 = math.exp %297 : vector<8x1xf32>
    %299 = vector.extract_strided_slice %290 {offsets = [0, 0], sizes = [8, 128], strides = [1, 1]} : vector<32x128xf32> to vector<8x128xf32>
    %300 = vector.broadcast %298 : vector<8x1xf32> to vector<8x128xf32>
    %301 = arith.mulf %300, %299 : vector<8x128xf32>
    %cst_127 = arith.constant 0.000000e+00 : f32
    %302 = vector.broadcast %cst_127 : f32 to vector<8x128xf32>
    %303 = arith.subf %302, %294 : vector<8x128xf32>
    %cst_128 = arith.constant 0.000000e+00 : f32
    %304 = vector.broadcast %cst_128 : f32 to vector<8x128xf32>
    %305 = arith.maximumf %303, %304 : vector<8x128xf32>
    %306 = math.absf %303 : vector<8x128xf32>
    %cst_129 = arith.constant 0.000000e+00 : f32
    %307 = vector.broadcast %cst_129 : f32 to vector<8x128xf32>
    %308 = arith.subf %307, %306 : vector<8x128xf32>
    %309 = math.exp %308 : vector<8x128xf32>
    %cst_130 = arith.constant 1.000000e+00 : f32
    %310 = vector.broadcast %cst_130 : f32 to vector<8x128xf32>
    %311 = arith.addf %310, %309 : vector<8x128xf32>
    %312 = math.log %311 : vector<8x128xf32>
    %313 = arith.addf %305, %312 : vector<8x128xf32>
    %314 = vector.broadcast %57 : vector<1x128xf32> to vector<8x128xf32>
    %315 = arith.addf %314, %301 : vector<8x128xf32>
    %cst_131 = arith.constant 9.99999993E-9 : f32
    %316 = vector.broadcast %cst_131 : f32 to vector<8x128xf32>
    %317 = arith.addf %315, %316 : vector<8x128xf32>
    %318 = math.log %317 : vector<8x128xf32>
    %319 = vector.broadcast %57 : vector<1x128xf32> to vector<8x128xf32>
    %320 = arith.mulf %319, %318 : vector<8x128xf32>
    %321 = vector.broadcast %61 : vector<1x128xf32> to vector<8x128xf32>
    %322 = arith.subf %321, %320 : vector<8x128xf32>
    %cst_132 = arith.constant 0.000000e+00 : f32
    %323 = vector.broadcast %cst_132 : f32 to vector<8x128xf32>
    %324 = arith.subf %323, %294 : vector<8x128xf32>
    %325 = arith.addf %324, %322 : vector<8x128xf32>
    %cst_133 = arith.constant 0.000000e+00 : f32
    %326 = vector.broadcast %cst_133 : f32 to vector<8x128xf32>
    %327 = arith.maximumf %325, %326 : vector<8x128xf32>
    %328 = math.absf %325 : vector<8x128xf32>
    %cst_134 = arith.constant 0.000000e+00 : f32
    %329 = vector.broadcast %cst_134 : f32 to vector<8x128xf32>
    %330 = arith.subf %329, %328 : vector<8x128xf32>
    %331 = math.exp %330 : vector<8x128xf32>
    %cst_135 = arith.constant 1.000000e+00 : f32
    %332 = vector.broadcast %cst_135 : f32 to vector<8x128xf32>
    %333 = arith.addf %332, %331 : vector<8x128xf32>
    %334 = math.log %333 : vector<8x128xf32>
    %335 = arith.addf %327, %334 : vector<8x128xf32>
    %336 = arith.subf %335, %313 : vector<8x128xf32>
    %cst_136 = arith.constant 0.000000e+00 : f32
    %337 = vector.broadcast %cst_136 : f32 to vector<8x128xf32>
    %338 = arith.subf %337, %294 : vector<8x128xf32>
    %339 = arith.subf %338, %313 : vector<8x128xf32>
    %340 = arith.addf %339, %322 : vector<8x128xf32>
    %cst_137 = arith.constant 9.99999993E-9 : f32
    %341 = vector.broadcast %cst_137 : f32 to vector<8x128xf32>
    %342 = arith.addf %301, %341 : vector<8x128xf32>
    %343 = math.log %342 : vector<8x128xf32>
    %344 = arith.mulf %0, %343 : vector<8x128xf32>
    %345 = arith.addf %340, %344 : vector<8x128xf32>
    %346 = arith.mulf %0, %318 : vector<8x128xf32>
    %347 = arith.subf %345, %346 : vector<8x128xf32>
    %348 = arith.addf %347, %236 : vector<8x128xf32>
    %349 = arith.select %238, %336, %348 : vector<8x128xi1>, vector<8x128xf32>
    %cst_138 = arith.constant dense<0.000000e+00> : vector<8xf32>
    %350 = vector.multi_reduction <add>, %349, %cst_138 [1] : vector<8x128xf32> to vector<8xf32>
    %351 = vector.shape_cast %350 : vector<8xf32> to vector<8x1xf32>
    %cst_139 = arith.constant 0.000000e+00 : f32
    %352 = vector.broadcast %cst_139 : f32 to vector<8x1xf32>
    %353 = arith.subf %352, %351 : vector<8x1xf32>
    %354 = vector.extract_strided_slice %55 {offsets = [0, 0], sizes = [8, 1], strides = [1, 1]} : vector<8x4xf32> to vector<8x1xf32>
    %355 = arith.mulf %354, %353 : vector<8x1xf32>
    %356 = arith.addf %292, %355 : vector<8x1xf32>
    %357 = vector.extract_strided_slice %265 {offsets = [0, 0], sizes = [8, 1], strides = [1, 1]} : vector<32x1xf32> to vector<8x1xf32>
    %358 = arith.addf %357, %39 : vector<8x1xf32>
    %359 = arith.mulf %354, %358 : vector<8x1xf32>
    %360 = arith.addf %293, %359 : vector<8x1xf32>
    %361 = vector.extract_strided_slice %280 {offsets = [8, 0], sizes = [8, 128], strides = [1, 1]} : vector<32x128xf32> to vector<8x128xf32>
    %362 = vector.extract_strided_slice %291 {offsets = [8, 0], sizes = [8, 1], strides = [1, 1]} : vector<32x1xf32> to vector<8x1xf32>
    %363 = arith.mulf %26, %362 : vector<8x1xf32>
    %364 = arith.addf %23, %363 : vector<8x1xf32>
    %365 = math.exp %364 : vector<8x1xf32>
    %366 = vector.extract_strided_slice %290 {offsets = [8, 0], sizes = [8, 128], strides = [1, 1]} : vector<32x128xf32> to vector<8x128xf32>
    %367 = vector.broadcast %365 : vector<8x1xf32> to vector<8x128xf32>
    %368 = arith.mulf %367, %366 : vector<8x128xf32>
    %cst_140 = arith.constant 0.000000e+00 : f32
    %369 = vector.broadcast %cst_140 : f32 to vector<8x128xf32>
    %370 = arith.subf %369, %361 : vector<8x128xf32>
    %cst_141 = arith.constant 0.000000e+00 : f32
    %371 = vector.broadcast %cst_141 : f32 to vector<8x128xf32>
    %372 = arith.maximumf %370, %371 : vector<8x128xf32>
    %373 = math.absf %370 : vector<8x128xf32>
    %cst_142 = arith.constant 0.000000e+00 : f32
    %374 = vector.broadcast %cst_142 : f32 to vector<8x128xf32>
    %375 = arith.subf %374, %373 : vector<8x128xf32>
    %376 = math.exp %375 : vector<8x128xf32>
    %cst_143 = arith.constant 1.000000e+00 : f32
    %377 = vector.broadcast %cst_143 : f32 to vector<8x128xf32>
    %378 = arith.addf %377, %376 : vector<8x128xf32>
    %379 = math.log %378 : vector<8x128xf32>
    %380 = arith.addf %372, %379 : vector<8x128xf32>
    %381 = vector.broadcast %57 : vector<1x128xf32> to vector<8x128xf32>
    %382 = arith.addf %381, %368 : vector<8x128xf32>
    %cst_144 = arith.constant 9.99999993E-9 : f32
    %383 = vector.broadcast %cst_144 : f32 to vector<8x128xf32>
    %384 = arith.addf %382, %383 : vector<8x128xf32>
    %385 = math.log %384 : vector<8x128xf32>
    %386 = vector.broadcast %57 : vector<1x128xf32> to vector<8x128xf32>
    %387 = arith.mulf %386, %385 : vector<8x128xf32>
    %388 = vector.broadcast %61 : vector<1x128xf32> to vector<8x128xf32>
    %389 = arith.subf %388, %387 : vector<8x128xf32>
    %cst_145 = arith.constant 0.000000e+00 : f32
    %390 = vector.broadcast %cst_145 : f32 to vector<8x128xf32>
    %391 = arith.subf %390, %361 : vector<8x128xf32>
    %392 = arith.addf %391, %389 : vector<8x128xf32>
    %cst_146 = arith.constant 0.000000e+00 : f32
    %393 = vector.broadcast %cst_146 : f32 to vector<8x128xf32>
    %394 = arith.maximumf %392, %393 : vector<8x128xf32>
    %395 = math.absf %392 : vector<8x128xf32>
    %cst_147 = arith.constant 0.000000e+00 : f32
    %396 = vector.broadcast %cst_147 : f32 to vector<8x128xf32>
    %397 = arith.subf %396, %395 : vector<8x128xf32>
    %398 = math.exp %397 : vector<8x128xf32>
    %cst_148 = arith.constant 1.000000e+00 : f32
    %399 = vector.broadcast %cst_148 : f32 to vector<8x128xf32>
    %400 = arith.addf %399, %398 : vector<8x128xf32>
    %401 = math.log %400 : vector<8x128xf32>
    %402 = arith.addf %394, %401 : vector<8x128xf32>
    %403 = arith.subf %402, %380 : vector<8x128xf32>
    %cst_149 = arith.constant 0.000000e+00 : f32
    %404 = vector.broadcast %cst_149 : f32 to vector<8x128xf32>
    %405 = arith.subf %404, %361 : vector<8x128xf32>
    %406 = arith.subf %405, %380 : vector<8x128xf32>
    %407 = arith.addf %406, %389 : vector<8x128xf32>
    %cst_150 = arith.constant 9.99999993E-9 : f32
    %408 = vector.broadcast %cst_150 : f32 to vector<8x128xf32>
    %409 = arith.addf %368, %408 : vector<8x128xf32>
    %410 = math.log %409 : vector<8x128xf32>
    %411 = arith.mulf %0, %410 : vector<8x128xf32>
    %412 = arith.addf %407, %411 : vector<8x128xf32>
    %413 = arith.mulf %0, %385 : vector<8x128xf32>
    %414 = arith.subf %412, %413 : vector<8x128xf32>
    %415 = arith.addf %414, %236 : vector<8x128xf32>
    %416 = arith.select %238, %403, %415 : vector<8x128xi1>, vector<8x128xf32>
    %cst_151 = arith.constant dense<0.000000e+00> : vector<8xf32>
    %417 = vector.multi_reduction <add>, %416, %cst_151 [1] : vector<8x128xf32> to vector<8xf32>
    %418 = vector.shape_cast %417 : vector<8xf32> to vector<8x1xf32>
    %cst_152 = arith.constant 0.000000e+00 : f32
    %419 = vector.broadcast %cst_152 : f32 to vector<8x1xf32>
    %420 = arith.subf %419, %418 : vector<8x1xf32>
    %421 = vector.extract_strided_slice %55 {offsets = [0, 1], sizes = [8, 1], strides = [1, 1]} : vector<8x4xf32> to vector<8x1xf32>
    %422 = arith.mulf %421, %420 : vector<8x1xf32>
    %423 = arith.addf %356, %422 : vector<8x1xf32>
    %424 = vector.extract_strided_slice %265 {offsets = [8, 0], sizes = [8, 1], strides = [1, 1]} : vector<32x1xf32> to vector<8x1xf32>
    %425 = arith.addf %424, %39 : vector<8x1xf32>
    %426 = arith.mulf %421, %425 : vector<8x1xf32>
    %427 = arith.addf %360, %426 : vector<8x1xf32>
    %428 = vector.extract_strided_slice %280 {offsets = [16, 0], sizes = [8, 128], strides = [1, 1]} : vector<32x128xf32> to vector<8x128xf32>
    %429 = vector.extract_strided_slice %291 {offsets = [16, 0], sizes = [8, 1], strides = [1, 1]} : vector<32x1xf32> to vector<8x1xf32>
    %430 = arith.mulf %26, %429 : vector<8x1xf32>
    %431 = arith.addf %23, %430 : vector<8x1xf32>
    %432 = math.exp %431 : vector<8x1xf32>
    %433 = vector.extract_strided_slice %290 {offsets = [16, 0], sizes = [8, 128], strides = [1, 1]} : vector<32x128xf32> to vector<8x128xf32>
    %434 = vector.broadcast %432 : vector<8x1xf32> to vector<8x128xf32>
    %435 = arith.mulf %434, %433 : vector<8x128xf32>
    %cst_153 = arith.constant 0.000000e+00 : f32
    %436 = vector.broadcast %cst_153 : f32 to vector<8x128xf32>
    %437 = arith.subf %436, %428 : vector<8x128xf32>
    %cst_154 = arith.constant 0.000000e+00 : f32
    %438 = vector.broadcast %cst_154 : f32 to vector<8x128xf32>
    %439 = arith.maximumf %437, %438 : vector<8x128xf32>
    %440 = math.absf %437 : vector<8x128xf32>
    %cst_155 = arith.constant 0.000000e+00 : f32
    %441 = vector.broadcast %cst_155 : f32 to vector<8x128xf32>
    %442 = arith.subf %441, %440 : vector<8x128xf32>
    %443 = math.exp %442 : vector<8x128xf32>
    %cst_156 = arith.constant 1.000000e+00 : f32
    %444 = vector.broadcast %cst_156 : f32 to vector<8x128xf32>
    %445 = arith.addf %444, %443 : vector<8x128xf32>
    %446 = math.log %445 : vector<8x128xf32>
    %447 = arith.addf %439, %446 : vector<8x128xf32>
    %448 = vector.broadcast %57 : vector<1x128xf32> to vector<8x128xf32>
    %449 = arith.addf %448, %435 : vector<8x128xf32>
    %cst_157 = arith.constant 9.99999993E-9 : f32
    %450 = vector.broadcast %cst_157 : f32 to vector<8x128xf32>
    %451 = arith.addf %449, %450 : vector<8x128xf32>
    %452 = math.log %451 : vector<8x128xf32>
    %453 = vector.broadcast %57 : vector<1x128xf32> to vector<8x128xf32>
    %454 = arith.mulf %453, %452 : vector<8x128xf32>
    %455 = vector.broadcast %61 : vector<1x128xf32> to vector<8x128xf32>
    %456 = arith.subf %455, %454 : vector<8x128xf32>
    %cst_158 = arith.constant 0.000000e+00 : f32
    %457 = vector.broadcast %cst_158 : f32 to vector<8x128xf32>
    %458 = arith.subf %457, %428 : vector<8x128xf32>
    %459 = arith.addf %458, %456 : vector<8x128xf32>
    %cst_159 = arith.constant 0.000000e+00 : f32
    %460 = vector.broadcast %cst_159 : f32 to vector<8x128xf32>
    %461 = arith.maximumf %459, %460 : vector<8x128xf32>
    %462 = math.absf %459 : vector<8x128xf32>
    %cst_160 = arith.constant 0.000000e+00 : f32
    %463 = vector.broadcast %cst_160 : f32 to vector<8x128xf32>
    %464 = arith.subf %463, %462 : vector<8x128xf32>
    %465 = math.exp %464 : vector<8x128xf32>
    %cst_161 = arith.constant 1.000000e+00 : f32
    %466 = vector.broadcast %cst_161 : f32 to vector<8x128xf32>
    %467 = arith.addf %466, %465 : vector<8x128xf32>
    %468 = math.log %467 : vector<8x128xf32>
    %469 = arith.addf %461, %468 : vector<8x128xf32>
    %470 = arith.subf %469, %447 : vector<8x128xf32>
    %cst_162 = arith.constant 0.000000e+00 : f32
    %471 = vector.broadcast %cst_162 : f32 to vector<8x128xf32>
    %472 = arith.subf %471, %428 : vector<8x128xf32>
    %473 = arith.subf %472, %447 : vector<8x128xf32>
    %474 = arith.addf %473, %456 : vector<8x128xf32>
    %cst_163 = arith.constant 9.99999993E-9 : f32
    %475 = vector.broadcast %cst_163 : f32 to vector<8x128xf32>
    %476 = arith.addf %435, %475 : vector<8x128xf32>
    %477 = math.log %476 : vector<8x128xf32>
    %478 = arith.mulf %0, %477 : vector<8x128xf32>
    %479 = arith.addf %474, %478 : vector<8x128xf32>
    %480 = arith.mulf %0, %452 : vector<8x128xf32>
    %481 = arith.subf %479, %480 : vector<8x128xf32>
    %482 = arith.addf %481, %236 : vector<8x128xf32>
    %483 = arith.select %238, %470, %482 : vector<8x128xi1>, vector<8x128xf32>
    %cst_164 = arith.constant dense<0.000000e+00> : vector<8xf32>
    %484 = vector.multi_reduction <add>, %483, %cst_164 [1] : vector<8x128xf32> to vector<8xf32>
    %485 = vector.shape_cast %484 : vector<8xf32> to vector<8x1xf32>
    %cst_165 = arith.constant 0.000000e+00 : f32
    %486 = vector.broadcast %cst_165 : f32 to vector<8x1xf32>
    %487 = arith.subf %486, %485 : vector<8x1xf32>
    %488 = vector.extract_strided_slice %55 {offsets = [0, 2], sizes = [8, 1], strides = [1, 1]} : vector<8x4xf32> to vector<8x1xf32>
    %489 = arith.mulf %488, %487 : vector<8x1xf32>
    %490 = arith.addf %423, %489 : vector<8x1xf32>
    %491 = vector.extract_strided_slice %265 {offsets = [16, 0], sizes = [8, 1], strides = [1, 1]} : vector<32x1xf32> to vector<8x1xf32>
    %492 = arith.addf %491, %39 : vector<8x1xf32>
    %493 = arith.mulf %488, %492 : vector<8x1xf32>
    %494 = arith.addf %427, %493 : vector<8x1xf32>
    %495 = vector.extract_strided_slice %280 {offsets = [24, 0], sizes = [8, 128], strides = [1, 1]} : vector<32x128xf32> to vector<8x128xf32>
    %496 = vector.extract_strided_slice %291 {offsets = [24, 0], sizes = [8, 1], strides = [1, 1]} : vector<32x1xf32> to vector<8x1xf32>
    %497 = arith.mulf %26, %496 : vector<8x1xf32>
    %498 = arith.addf %23, %497 : vector<8x1xf32>
    %499 = math.exp %498 : vector<8x1xf32>
    %500 = vector.extract_strided_slice %290 {offsets = [24, 0], sizes = [8, 128], strides = [1, 1]} : vector<32x128xf32> to vector<8x128xf32>
    %501 = vector.broadcast %499 : vector<8x1xf32> to vector<8x128xf32>
    %502 = arith.mulf %501, %500 : vector<8x128xf32>
    %cst_166 = arith.constant 0.000000e+00 : f32
    %503 = vector.broadcast %cst_166 : f32 to vector<8x128xf32>
    %504 = arith.subf %503, %495 : vector<8x128xf32>
    %cst_167 = arith.constant 0.000000e+00 : f32
    %505 = vector.broadcast %cst_167 : f32 to vector<8x128xf32>
    %506 = arith.maximumf %504, %505 : vector<8x128xf32>
    %507 = math.absf %504 : vector<8x128xf32>
    %cst_168 = arith.constant 0.000000e+00 : f32
    %508 = vector.broadcast %cst_168 : f32 to vector<8x128xf32>
    %509 = arith.subf %508, %507 : vector<8x128xf32>
    %510 = math.exp %509 : vector<8x128xf32>
    %cst_169 = arith.constant 1.000000e+00 : f32
    %511 = vector.broadcast %cst_169 : f32 to vector<8x128xf32>
    %512 = arith.addf %511, %510 : vector<8x128xf32>
    %513 = math.log %512 : vector<8x128xf32>
    %514 = arith.addf %506, %513 : vector<8x128xf32>
    %515 = vector.broadcast %57 : vector<1x128xf32> to vector<8x128xf32>
    %516 = arith.addf %515, %502 : vector<8x128xf32>
    %cst_170 = arith.constant 9.99999993E-9 : f32
    %517 = vector.broadcast %cst_170 : f32 to vector<8x128xf32>
    %518 = arith.addf %516, %517 : vector<8x128xf32>
    %519 = math.log %518 : vector<8x128xf32>
    %520 = vector.broadcast %57 : vector<1x128xf32> to vector<8x128xf32>
    %521 = arith.mulf %520, %519 : vector<8x128xf32>
    %522 = vector.broadcast %61 : vector<1x128xf32> to vector<8x128xf32>
    %523 = arith.subf %522, %521 : vector<8x128xf32>
    %cst_171 = arith.constant 0.000000e+00 : f32
    %524 = vector.broadcast %cst_171 : f32 to vector<8x128xf32>
    %525 = arith.subf %524, %495 : vector<8x128xf32>
    %526 = arith.addf %525, %523 : vector<8x128xf32>
    %cst_172 = arith.constant 0.000000e+00 : f32
    %527 = vector.broadcast %cst_172 : f32 to vector<8x128xf32>
    %528 = arith.maximumf %526, %527 : vector<8x128xf32>
    %529 = math.absf %526 : vector<8x128xf32>
    %cst_173 = arith.constant 0.000000e+00 : f32
    %530 = vector.broadcast %cst_173 : f32 to vector<8x128xf32>
    %531 = arith.subf %530, %529 : vector<8x128xf32>
    %532 = math.exp %531 : vector<8x128xf32>
    %cst_174 = arith.constant 1.000000e+00 : f32
    %533 = vector.broadcast %cst_174 : f32 to vector<8x128xf32>
    %534 = arith.addf %533, %532 : vector<8x128xf32>
    %535 = math.log %534 : vector<8x128xf32>
    %536 = arith.addf %528, %535 : vector<8x128xf32>
    %537 = arith.subf %536, %514 : vector<8x128xf32>
    %cst_175 = arith.constant 0.000000e+00 : f32
    %538 = vector.broadcast %cst_175 : f32 to vector<8x128xf32>
    %539 = arith.subf %538, %495 : vector<8x128xf32>
    %540 = arith.subf %539, %514 : vector<8x128xf32>
    %541 = arith.addf %540, %523 : vector<8x128xf32>
    %cst_176 = arith.constant 9.99999993E-9 : f32
    %542 = vector.broadcast %cst_176 : f32 to vector<8x128xf32>
    %543 = arith.addf %502, %542 : vector<8x128xf32>
    %544 = math.log %543 : vector<8x128xf32>
    %545 = arith.mulf %0, %544 : vector<8x128xf32>
    %546 = arith.addf %541, %545 : vector<8x128xf32>
    %547 = arith.mulf %0, %519 : vector<8x128xf32>
    %548 = arith.subf %546, %547 : vector<8x128xf32>
    %549 = arith.addf %548, %236 : vector<8x128xf32>
    %550 = arith.select %238, %537, %549 : vector<8x128xi1>, vector<8x128xf32>
    %cst_177 = arith.constant dense<0.000000e+00> : vector<8xf32>
    %551 = vector.multi_reduction <add>, %550, %cst_177 [1] : vector<8x128xf32> to vector<8xf32>
    %552 = vector.shape_cast %551 : vector<8xf32> to vector<8x1xf32>
    %cst_178 = arith.constant 0.000000e+00 : f32
    %553 = vector.broadcast %cst_178 : f32 to vector<8x1xf32>
    %554 = arith.subf %553, %552 : vector<8x1xf32>
    %555 = vector.extract_strided_slice %55 {offsets = [0, 3], sizes = [8, 1], strides = [1, 1]} : vector<8x4xf32> to vector<8x1xf32>
    %556 = arith.mulf %555, %554 : vector<8x1xf32>
    %557 = arith.addf %490, %556 : vector<8x1xf32>
    %558 = vector.extract_strided_slice %265 {offsets = [24, 0], sizes = [8, 1], strides = [1, 1]} : vector<32x1xf32> to vector<8x1xf32>
    %559 = arith.addf %558, %39 : vector<8x1xf32>
    %560 = arith.mulf %555, %559 : vector<8x1xf32>
    %561 = arith.addf %494, %560 : vector<8x1xf32>
    %cst_179 = arith.constant 1.000000e-07 : f32
    %562 = vector.broadcast %cst_179 : f32 to vector<8x4xf32>
    %563 = arith.maximumf %55, %562 : vector<8x4xf32>
    %564 = math.log %563 : vector<8x4xf32>
    %cst_180 = arith.constant 1.38629436 : f32
    %565 = vector.broadcast %cst_180 : f32 to vector<8x4xf32>
    %566 = arith.addf %564, %565 : vector<8x4xf32>
    %567 = arith.mulf %55, %566 : vector<8x4xf32>
    %cst_181 = arith.constant dense<0.000000e+00> : vector<8xf32>
    %568 = vector.multi_reduction <add>, %567, %cst_181 [1] : vector<8x4xf32> to vector<8xf32>
    %569 = vector.shape_cast %568 : vector<8xf32> to vector<8x1xf32>
    %570 = arith.addf %561, %569 : vector<8x1xf32>
    %571 = tpu.iota {dimensions = array<i32: 1>} : vector<8x128xi32>
    %c0_i32 = arith.constant 0 : i32
    %572 = vector.broadcast %c0_i32 : i32 to vector<8x128xi32>
    %573 = arith.cmpi eq, %571, %572 : vector<8x128xi32>
    %cst_182 = arith.constant 0.000000e+00 : f32
    %574 = vector.shape_cast %557 : vector<8x1xf32> to vector<8x1xf32>
    %575 = vector.broadcast %574 : vector<8x1xf32> to vector<8x128xf32>
    %576 = vector.broadcast %cst_182 : f32 to vector<8x128xf32>
    %577 = arith.select %573, %575, %576 : vector<8x128xi1>, vector<8x128xf32>
    %c1_i32 = arith.constant 1 : i32
    %578 = vector.broadcast %c1_i32 : i32 to vector<8x128xi32>
    %579 = arith.cmpi eq, %571, %578 : vector<8x128xi32>
    %cst_183 = arith.constant 0.000000e+00 : f32
    %580 = vector.shape_cast %570 : vector<8x1xf32> to vector<8x1xf32>
    %581 = vector.broadcast %580 : vector<8x1xf32> to vector<8x128xf32>
    %582 = vector.broadcast %cst_183 : f32 to vector<8x128xf32>
    %583 = arith.select %579, %581, %582 : vector<8x128xi1>, vector<8x128xf32>
    %584 = arith.addf %577, %583 : vector<8x128xf32>
    %c0_184 = arith.constant 0 : index
    %c0_185 = arith.constant 0 : index
    %585 = vector.load %arg20[%c0_184, %c0_185] : memref<8x128xf32, #tpu.memory_space<vmem>>, vector<8x128xf32>
    tpu.vector_store %arg20[%c0_184, %c0_185], %584 {strides = array<i32>} : memref<8x128xf32, #tpu.memory_space<vmem>>, vector<8x128xf32>,
    return
  }
  func.func @transform_0(%arg0: i32) -> (i32, i32) {
    %c0_i32 = arith.constant 0 : i32
    %c0_i32_0 = arith.constant 0 : i32
    %c0_i32_1 = arith.constant 0 : i32
    return %c0_i32, %c0_i32_0 : i32, i32
  }
  func.func @transform_1(%arg0: i32) -> (i32, i32) {
    %c0_i32 = arith.constant 0 : i32
    %c0_i32_0 = arith.constant 0 : i32
    %c0_i32_1 = arith.constant 0 : i32
    return %c0_i32, %c0_i32_0 : i32, i32
  }
  func.func @transform_2(%arg0: i32) -> (i32, i32) {
    %c0_i32 = arith.constant 0 : i32
    %c0_i32_0 = arith.constant 0 : i32
    %c0_i32_1 = arith.constant 0 : i32
    return %c0_i32, %c0_i32_0 : i32, i32
  }
  func.func @transform_3(%arg0: i32) -> (i32, i32) {
    %c0_i32 = arith.constant 0 : i32
    %c0_i32_0 = arith.constant 0 : i32
    %c0_i32_1 = arith.constant 0 : i32
    return %c0_i32, %c0_i32_0 : i32, i32
  }
  func.func @transform_4(%arg0: i32) -> (i32, i32) {
    %c0_i32 = arith.constant 0 : i32
    %c0_i32_0 = arith.constant 0 : i32
    %c0_i32_1 = arith.constant 0 : i32
    return %c0_i32, %c0_i32_0 : i32, i32
  }
  func.func @transform_5(%arg0: i32) -> (i32, i32) {
    %c0_i32 = arith.constant 0 : i32
    %c0_i32_0 = arith.constant 0 : i32
    %c0_i32_1 = arith.constant 0 : i32
    return %c0_i32, %c0_i32_0 : i32, i32
  }
  func.func @transform_6(%arg0: i32) -> (i32, i32) {
    %c0_i32 = arith.constant 0 : i32
    %c0_i32_0 = arith.constant 0 : i32
    %c0_i32_1 = arith.constant 0 : i32
    return %c0_i32, %c0_i32_0 : i32, i32
  }
  func.func @transform_7(%arg0: i32) -> (i32, i32) {
    %c0_i32 = arith.constant 0 : i32
    %c0_i32_0 = arith.constant 0 : i32
    %c0_i32_1 = arith.constant 0 : i32
    return %c0_i32, %c0_i32_0 : i32, i32
  }
  func.func @transform_8(%arg0: i32) -> (i32, i32) {
    %c0_i32 = arith.constant 0 : i32
    %c0_i32_0 = arith.constant 0 : i32
    %c0_i32_1 = arith.constant 0 : i32
    return %c0_i32, %c0_i32_0 : i32, i32
  }
  func.func @transform_9(%arg0: i32) -> (i32, i32) {
    %c0_i32 = arith.constant 0 : i32
    %c0_i32_0 = arith.constant 0 : i32
    %c0_i32_1 = arith.constant 0 : i32
    return %c0_i32, %c0_i32_0 : i32, i32
  }
  func.func @transform_10(%arg0: i32) -> (i32, i32) {
    %c0_i32 = arith.constant 0 : i32
    %c0_i32_0 = arith.constant 0 : i32
    %c0_i32_1 = arith.constant 0 : i32
    return %c0_i32, %c0_i32_0 : i32, i32
  }
  func.func @transform_11(%arg0: i32) -> (i32, i32) {
    %c0_i32 = arith.constant 0 : i32
    %c0_i32_0 = arith.constant 0 : i32
    %c0_i32_1 = arith.constant 0 : i32
    return %c0_i32, %c0_i32_0 : i32, i32
  }
  func.func @transform_12(%arg0: i32) -> (i32, i32) {
    %c0_i32 = arith.constant 0 : i32
    %c0_i32_0 = arith.constant 0 : i32
    %c0_i32_1 = arith.constant 0 : i32
    return %c0_i32, %c0_i32_0 : i32, i32
  }
  func.func @transform_13(%arg0: i32) -> (i32, i32) {
    %c0_i32 = arith.constant 0 : i32
    %c0_i32_0 = arith.constant 0 : i32
    %c0_i32_1 = arith.constant 0 : i32
    return %c0_i32, %c0_i32_0 : i32, i32
  }
  func.func @transform_14(%arg0: i32) -> (i32, i32) {
    %c0_i32 = arith.constant 0 : i32
    %c0_i32_0 = arith.constant 0 : i32
    %c0_i32_1 = arith.constant 0 : i32
    return %c0_i32, %c0_i32_0 : i32, i32
  }
  func.func @transform_15(%arg0: i32) -> (i32, i32) {
    %c0_i32 = arith.constant 0 : i32
    %c0_i32_0 = arith.constant 0 : i32
    %c0_i32_1 = arith.constant 0 : i32
    return %c0_i32, %c0_i32_0 : i32, i32
  }
  func.func @transform_16(%arg0: i32) -> (i32, i32) {
    %c0_i32 = arith.constant 0 : i32
    %c0_i32_0 = arith.constant 0 : i32
    %c0_i32_1 = arith.constant 0 : i32
    return %c0_i32, %c0_i32_0 : i32, i32
  }
  func.func @transform_17(%arg0: i32) -> (i32, i32) {
    %c0_i32 = arith.constant 0 : i32
    %c0_i32_0 = arith.constant 0 : i32
    %c0_i32_1 = arith.constant 0 : i32
    return %c0_i32, %c0_i32_0 : i32, i32
  }
  func.func @transform_18(%arg0: i32) -> (i32, i32) {
    %c0_i32 = arith.constant 0 : i32
    %c0_i32_0 = arith.constant 0 : i32
    %c0_i32_1 = arith.constant 0 : i32
    return %c0_i32, %c0_i32_0 : i32, i32
  }
  func.func @transform_19(%arg0: i32) -> (i32, i32) {
    %c0_i32 = arith.constant 0 : i32
    %c0_i32_0 = arith.constant 0 : i32
    %c0_i32_1 = arith.constant 0 : i32
    return %c0_i32, %c0_i32_0 : i32, i32
  }
}

</mosaic_0001>

<llo_original>
// kernel: vaec_forward.1
$region0: #{vaec_forward.1}
  #allocation0 [shape = 'u32[]', space=smem, size = 0x4, offset = 0x4, fixed_abs, tag = 'smem constant byte address 0x4 - core index']
  #allocation1 [shape = 'u32[144,128]{1,0:T(1,128)}', space=vmem, size = 0x12000, scoped, tag = 'internal scratch']
  %s0 = inlined_call_operand.vmem [shape: f32[8,128], index: 0, kind: input, shape index: {}]
  %s1 = inlined_call_operand.vmem [shape: f32[32,8], index: 1, kind: input, shape index: {}]
  %s2 = inlined_call_operand.vmem [shape: f32[32,1], index: 2, kind: input, shape index: {}]
  %s3 = inlined_call_operand.vmem [shape: f32[8,1], index: 3, kind: input, shape index: {}]
  %s4 = inlined_call_operand.vmem [shape: f32[8,1], index: 4, kind: input, shape index: {}]
  %s5 = inlined_call_operand.vmem [shape: f32[1,128], index: 5, kind: input, shape index: {}]
  %s6 = inlined_call_operand.vmem [shape: bf16[128,96], index: 6, kind: input, shape index: {}]
  %s7 = inlined_call_operand.vmem [shape: f32[1,96], index: 7, kind: input, shape index: {}]
  %s8 = inlined_call_operand.vmem [shape: f32[32,32], index: 8, kind: input, shape index: {}]
  %s9 = inlined_call_operand.vmem [shape: bf16[32,16], index: 9, kind: input, shape index: {}]
  %s10 = inlined_call_operand.vmem [shape: f32[1,16], index: 10, kind: input, shape index: {}]
  %s11 = inlined_call_operand.vmem [shape: bf16[32,2], index: 11, kind: input, shape index: {}]
  %s12 = inlined_call_operand.vmem [shape: f32[1,2], index: 12, kind: input, shape index: {}]
  %s13 = inlined_call_operand.vmem [shape: bf16[32,4], index: 13, kind: input, shape index: {}]
  %s14 = inlined_call_operand.vmem [shape: f32[1,4], index: 14, kind: input, shape index: {}]
  %s15 = inlined_call_operand.vmem [shape: bf16[8,32], index: 15, kind: input, shape index: {}]
  %s16 = inlined_call_operand.vmem [shape: f32[32,32], index: 16, kind: input, shape index: {}]
  %s17 = inlined_call_operand.vmem [shape: bf16[32,256], index: 17, kind: input, shape index: {}]
  %s18 = inlined_call_operand.vmem [shape: f32[1,256], index: 18, kind: input, shape index: {}]
  %s19 = inlined_call_operand.vmem [shape: f32[8,128], index: 19, kind: output, shape index: {}]
  %s20 = sld [smem:[#allocation0]]
  $region86: #{vaec_forward.1} parent=0
    _
  %s22 = ssub.s32 1, %s20
  %s23 = scalar_select 0, %s22, %s20
  // Predicated region
  $region2: #{vaec_forward.1} parent=0 // pred_check
    _
  $region3: #{vaec_forward.1} parent=0 // pred_check_branch
    %25 = sbr.rel (0) target = $region5
  $region4: #{vaec_forward.1} parent=0 // pred_region
    _
  $region5: #{vaec_forward.1} parent=0 // pred_fallthru
    _
  // Predicated region
  $region6: #{vaec_forward.1} parent=0 // pred_check
    _
  $region7: #{vaec_forward.1} parent=0 // pred_check_branch
    %27 = sbr.rel (0) target = $region9
  $region8: #{vaec_forward.1} parent=0 // pred_region
    _
  $region9: #{vaec_forward.1} parent=0 // pred_fallthru
    _
  // Predicated region
  $region10: #{vaec_forward.1} parent=0 // pred_check
    _
  $region11: #{vaec_forward.1} parent=0 // pred_check_branch
    %29 = sbr.rel (0) target = $region13
  $region12: #{vaec_forward.1} parent=0 // pred_region
    _
  $region13: #{vaec_forward.1} parent=0 // pred_fallthru
    _
  // Predicated region
  $region14: #{vaec_forward.1} parent=0 // pred_check
    _
  $region15: #{vaec_forward.1} parent=0 // pred_check_branch
    %31 = sbr.rel (0) target = $region17
  $region16: #{vaec_forward.1} parent=0 // pred_region
    _
  $region17: #{vaec_forward.1} parent=0 // pred_fallthru
    _
  // Predicated region
  $region18: #{vaec_forward.1} parent=0 // pred_check
    _
  $region19: #{vaec_forward.1} parent=0 // pred_check_branch
    %33 = sbr.rel (0) target = $region21
  $region20: #{vaec_forward.1} parent=0 // pred_region
    _
  $region21: #{vaec_forward.1} parent=0 // pred_fallthru
    _
  // Predicated region
  $region22: #{vaec_forward.1} parent=0 // pred_check
    _
  $region23: #{vaec_forward.1} parent=0 // pred_check_branch
    %35 = sbr.rel (0) target = $region25
  $region24: #{vaec_forward.1} parent=0 // pred_region
    _
  $region25: #{vaec_forward.1} parent=0 // pred_fallthru
    _
  // Predicated region
  $region26: #{vaec_forward.1} parent=0 // pred_check
    _
  $region27: #{vaec_forward.1} parent=0 // pred_check_branch
    %37 = sbr.rel (0) target = $region29
  $region28: #{vaec_forward.1} parent=0 // pred_region
    _
  $region29: #{vaec_forward.1} parent=0 // pred_fallthru
    _
  // Predicated region
  $region30: #{vaec_forward.1} parent=0 // pred_check
    _
  $region31: #{vaec_forward.1} parent=0 // pred_check_branch
    %39 = sbr.rel (0) target = $region33
  $region32: #{vaec_forward.1} parent=0 // pred_region
    _
  $region33: #{vaec_forward.1} parent=0 // pred_fallthru
    _
  // Predicated region
  $region34: #{vaec_forward.1} parent=0 // pred_check
    _
  $region35: #{vaec_forward.1} parent=0 // pred_check_branch
    %41 = sbr.rel (0) target = $region37
  $region36: #{vaec_forward.1} parent=0 // pred_region
    _
  $region37: #{vaec_forward.1} parent=0 // pred_fallthru
    _
  // Predicated region
  $region38: #{vaec_forward.1} parent=0 // pred_check
    _
  $region39: #{vaec_forward.1} parent=0 // pred_check_branch
    %43 = sbr.rel (0) target = $region41
  $region40: #{vaec_forward.1} parent=0 // pred_region
    _
  $region41: #{vaec_forward.1} parent=0 // pred_fallthru
    _
  // Predicated region
  $region42: #{vaec_forward.1} parent=0 // pred_check
    _
  $region43: #{vaec_forward.1} parent=0 // pred_check_branch
    %45 = sbr.rel (0) target = $region45
  $region44: #{vaec_forward.1} parent=0 // pred_region
    _
  $region45: #{vaec_forward.1} parent=0 // pred_fallthru
    _
  // Predicated region
  $region46: #{vaec_forward.1} parent=0 // pred_check
    _
  $region47: #{vaec_forward.1} parent=0 // pred_check_branch
    %47 = sbr.rel (0) target = $region49
  $region48: #{vaec_forward.1} parent=0 // pred_region
    _
  $region49: #{vaec_forward.1} parent=0 // pred_fallthru
    _
  // Predicated region
  $region50: #{vaec_forward.1} parent=0 // pred_check
    _
  $region51: #{vaec_forward.1} parent=0 // pred_check_branch
    %49 = sbr.rel (0) target = $region53
  $region52: #{vaec_forward.1} parent=0 // pred_region
    _
  $region53: #{vaec_forward.1} parent=0 // pred_fallthru
    _
  // Predicated region
  $region54: #{vaec_forward.1} parent=0 // pred_check
    _
  $region55: #{vaec_forward.1} parent=0 // pred_check_branch
    %51 = sbr.rel (0) target = $region57
  $region56: #{vaec_forward.1} parent=0 // pred_region
    _
  $region57: #{vaec_forward.1} parent=0 // pred_fallthru
    _
  // Predicated region
  $region58: #{vaec_forward.1} parent=0 // pred_check
    _
  $region59: #{vaec_forward.1} parent=0 // pred_check_branch
    %53 = sbr.rel (0) target = $region61
  $region60: #{vaec_forward.1} parent=0 // pred_region
    _
  $region61: #{vaec_forward.1} parent=0 // pred_fallthru
    _
  // Predicated region
  $region62: #{vaec_forward.1} parent=0 // pred_check
    _
  $region63: #{vaec_forward.1} parent=0 // pred_check_branch
    %55 = sbr.rel (0) target = $region65
  $region64: #{vaec_forward.1} parent=0 // pred_region
    _
  $region65: #{vaec_forward.1} parent=0 // pred_fallthru
    _
  // Predicated region
  $region66: #{vaec_forward.1} parent=0 // pred_check
    _
  $region67: #{vaec_forward.1} parent=0 // pred_check_branch
    %57 = sbr.rel (0) target = $region69
  $region68: #{vaec_forward.1} parent=0 // pred_region
    _
  $region69: #{vaec_forward.1} parent=0 // pred_fallthru
    _
  // Predicated region
  $region70: #{vaec_forward.1} parent=0 // pred_check
    _
  $region71: #{vaec_forward.1} parent=0 // pred_check_branch
    %59 = sbr.rel (0) target = $region73
  $region72: #{vaec_forward.1} parent=0 // pred_region
    _
  $region73: #{vaec_forward.1} parent=0 // pred_fallthru
    _
  // Predicated region
  $region74: #{vaec_forward.1} parent=0 // pred_check
    _
  $region75: #{vaec_forward.1} parent=0 // pred_check_branch
    %61 = sbr.rel (0) target = $region77
  $region76: #{vaec_forward.1} parent=0 // pred_region
    _
  $region77: #{vaec_forward.1} parent=0 // pred_fallthru
    _
  %v63 = vld [vmem:[%s0] sm:$0xff]
  %v64 = vadd.f32 %v63, 1.0
  %v65 = vlog2.pop %v64
  %v66 = vmul.f32 %v65, 0.6931472
  %v67 = vld [vmem:[%s6] sm:$0xf]
  %v68 = vld [vmem:[%s6 + $0x4] sm:$0xf]
  %v69 = vld [vmem:[%s6 + $0x8] sm:$0xf]
  %v70 = vld [vmem:[%s6 + $0xc] sm:$0xf]
  %v71 = vld [vmem:[%s6 + $0x10] sm:$0xf]
  %v72 = vld [vmem:[%s6 + $0x14] sm:$0xf]
  %v73 = vld [vmem:[%s6 + $0x18] sm:$0xf]
  %v74 = vld [vmem:[%s6 + $0x1c] sm:$0xf]
  %v75 = vld [vmem:[%s6 + $0x20] sm:$0xf]
  %v76 = vld [vmem:[%s6 + $0x24] sm:$0xf]
  %v77 = vld [vmem:[%s6 + $0x28] sm:$0xf]
  %v78 = vld [vmem:[%s6 + $0x2c] sm:$0xf]
  %v79 = vld [vmem:[%s6 + $0x30] sm:$0xf]
  %v80 = vld [vmem:[%s6 + $0x34] sm:$0xf]
  %v81 = vld [vmem:[%s6 + $0x38] sm:$0xf]
  %v82 = vld [vmem:[%s6 + $0x3c] sm:$0xf]
  %v83 = vpack.c.bf16 %v66, %v66
  %v84 = vld [vmem:[%s7] sm:$0x1]
  %v86 = vlaneseq
  %v87 = vshrl.u32 %v86, 7
  %v88 = vsub.s32 0, %v87
  %v89 = vrot.slane %v84, %v88
  %v107 = vunpack.c.l.b16 %v67
  %v108 = vunpack.c.l.b16 %v68
  %v109 = vunpack.c.l.b16 %v69
  %v110 = vunpack.c.l.b16 %v70
  %v111 = vunpack.c.l.b16 %v71
  %v112 = vunpack.c.l.b16 %v72
  %v113 = vunpack.c.l.b16 %v73
  %v114 = vunpack.c.l.b16 %v74
  %v115 = vunpack.c.l.b16 %v75
  %v116 = vunpack.c.l.b16 %v76
  %v117 = vunpack.c.l.b16 %v77
  %v118 = vunpack.c.l.b16 %v78
  %v119 = vunpack.c.l.b16 %v79
  %v120 = vunpack.c.l.b16 %v80
  %v121 = vunpack.c.l.b16 %v81
  %v122 = vunpack.c.l.b16 %v82
  %v123 = vpack.c.b16 %v108, %v107
  %v124 = vpack.c.b16 %v110, %v109
  %v125 = vpack.c.b16 %v112, %v111
  %v126 = vpack.c.b16 %v114, %v113
  %v127 = vpack.c.b16 %v116, %v115
  %v128 = vpack.c.b16 %v118, %v117
  %v129 = vpack.c.b16 %v120, %v119
  %v130 = vpack.c.b16 %v122, %v121
  %139 = vmatprep.subr.bf16.mxu0 0
  %140 = vmatpush1.bf16.msra.mxu0 %v130
  %141 = vmatprep.subr.bf16.mxu0 0
  %142 = vmatpush1.bf16.msra.mxu0 %v129
  %143 = vmatprep.subr.bf16.mxu0 0
  %144 = vmatpush1.bf16.msra.mxu0 %v128
  %145 = vmatprep.subr.bf16.mxu0 0
  %146 = vmatpush1.bf16.msra.mxu0 %v127
  %147 = vmatprep.subr.bf16.mxu0 0
  %148 = vmatpush1.bf16.msra.mxu0 %v126
  %149 = vmatprep.subr.bf16.mxu0 0
  %150 = vmatpush1.bf16.msra.mxu0 %v125
  %151 = vmatprep.subr.bf16.mxu0 0
  %152 = vmatpush1.bf16.msra.mxu0 %v124
  %153 = vmatprep.subr.bf16.mxu0 0
  %154 = vmatpush1.bf16.msra.mxu0 %v123
  %155 = vmatprep.subr.bf16.mxu0 0
  %156 = vmatpush2.bf16.msra.mxu0 0
  %157 = vmatprep.subr.bf16.mxu0 0
  %158 = vmatpush2.bf16.msra.mxu0 0
  %159 = vmatprep.subr.bf16.mxu0 0
  %160 = vmatpush2.bf16.msra.mxu0 0
  %161 = vmatprep.subr.bf16.mxu0 0
  %162 = vmatpush2.bf16.msra.mxu0 0
  %163 = vmatprep.subr.bf16.mxu0 0
  %164 = vmatpush2.bf16.msra.mxu0 0
  %165 = vmatprep.subr.bf16.mxu0 0
  %166 = vmatpush2.bf16.msra.mxu0 0
  %167 = vmatprep.subr.bf16.mxu0 0
  %168 = vmatpush2.bf16.msra.mxu0 0
  %169 = vmatprep.subr.bf16.mxu0 0
  %170 = vmatpush2.bf16.msra.mxu0 0
  %171 = vmatprep.mubr.bf16.mxu0 0
  %172 = vmatmul.mubr.bf16.gmra.mxu0 %v83
  %v173 = vpop.f32.mrf.mxu0
  %v174 = vadd.f32 %v89, %v173
  %v175 = vpop.f32.mrf.mxu0
  %v176 = vpop.f32.mrf.mxu0
  %v177 = vpop.f32.mrf.mxu0
  %178 = vdwg.mxu0
  %v179 = vmax.f32 %v174, 0.0
  %v180 = vld [vmem:[%s11] sm:$0xf]
  %v181 = vld [vmem:[%s11 + $0x4] sm:$0xf]
  %v182 = vld [vmem:[%s11 + $0x8] sm:$0xf]
  %v183 = vld [vmem:[%s11 + $0xc] sm:$0xf]
  %v184 = vpack.c.bf16 %v179, %v179
  %v185 = vld [vmem:[%s12] sm:$0x1]
  %v187 = vlaneseq
  %v188 = vshrl.u32 %v187, 7
  %v189 = vsub.s32 0, %v188
  %v190 = vrot.slane %v185, %v189
  %193 = vrot.lane.b32.xlu0 %v184, 96
  %v194 = vpop.permute.xlu0 %193
  %v199 = vunpack.c.l.b16 %v180
  %v200 = vunpack.c.l.b16 %v181
  %v201 = vunpack.c.l.b16 %v182
  %v202 = vunpack.c.l.b16 %v183
  %v203 = vpack.c.b16 %v200, %v199
  %v204 = vpack.c.b16 %v202, %v201
  %vm207 = vcmask 261120
  %v209 = vsel %vm207, %v194, 0
  %211 = vmatprep.subr.bf16.mxu0 0
  %212 = vmatpush1.bf16.msra.mxu0 0
  %213 = vmatprep.subr.bf16.mxu0 0
  %214 = vmatpush1.bf16.msra.mxu0 0
  %215 = vmatprep.subr.bf16.mxu0 0
  %216 = vmatpush1.bf16.msra.mxu0 0
  %217 = vmatprep.subr.bf16.mxu0 0
  %218 = vmatpush1.bf16.msra.mxu0 0
  %219 = vmatprep.subr.bf16.mxu0 0
  %220 = vmatpush1.bf16.msra.mxu0 0
  %221 = vmatprep.subr.bf16.mxu0 0
  %222 = vmatpush1.bf16.msra.mxu0 0
  %223 = vmatprep.subr.bf16.mxu0 0
  %224 = vmatpush1.bf16.msra.mxu0 %v204
  %225 = vmatprep.subr.bf16.mxu0 0
  %226 = vmatpush1.bf16.msra.mxu0 %v203
  %227 = vmatprep.subr.bf16.mxu0 0
  %228 = vmatpush2.bf16.msra.mxu0 0
  %229 = vmatprep.subr.bf16.mxu0 0
  %230 = vmatpush2.bf16.msra.mxu0 0
  %231 = vmatprep.subr.bf16.mxu0 0
  %232 = vmatpush2.bf16.msra.mxu0 0
  %233 = vmatprep.subr.bf16.mxu0 0
  %234 = vmatpush2.bf16.msra.mxu0 0
  %235 = vmatprep.subr.bf16.mxu0 0
  %236 = vmatpush2.bf16.msra.mxu0 0
  %237 = vmatprep.subr.bf16.mxu0 0
  %238 = vmatpush2.bf16.msra.mxu0 0
  %239 = vmatprep.subr.bf16.mxu0 0
  %240 = vmatpush2.bf16.msra.mxu0 0
  %241 = vmatprep.subr.bf16.mxu0 0
  %242 = vmatpush2.bf16.msra.mxu0 0
  %243 = vmatprep.mubr.bf16.mxu0 0
  %244 = vmatmul.mubr.bf16.gmra.mxu0 %v209
  %v245 = vpop.f32.mrf.mxu0
  %v246 = vadd.f32 %v190, %v245
  %v247 = vpop.f32.mrf.mxu0
  %v248 = vpop.f32.mrf.mxu0
  %v249 = vpop.f32.mrf.mxu0
  %250 = vdwg.mxu0
  %v251 = vmul.f32 %v246, 1.442695
  %v252 = vpow.pop %v251
  %v253 = vrsqrt.pop %v252
  %v254 = vmul.f32 %v252, %v253
  %vm255 = vcmp.eq.f32.partialorder %v252, inf
  %v256 = vsel %vm255, %v252, %v254
  %vm257 = vcmp.eq.f32.partialorder %v252, 0.0
  %v258 = vand.u32 %v252, 2147483648
  %v259 = vsel %vm257, %v258, %v256
  %v260 = vld [vmem:[%s3] sm:$0xff]
  %v261 = vld [vmem:[%s4] sm:$0xff]
  %263 = vrot.lane.b32.xlu0 %v261, 1
  %v264 = vpop.permute.xlu0 %263
  %v266 = vrcp.pop %v264
  %v267 = vmul.f32 %v252, %v266
  %v268 = vsub.f32 %v246, %v260
  %v269 = vmul.f32 %v268, %v268
  %v270 = vrcp.pop %v261
  %v271 = vmul.f32 %v269, %v270
  %273 = vrot.lane.b32.xlu0 %v271, 1
  %v274 = vpop.permute.xlu0 %273
  %v276 = vadd.f32 %v267, %v274
  %v277 = vsub.f32 %v276, 1.0
  %v278 = vlog2.pop %v267
  %v279 = vmul.f32 %v278, 0.6931472
  %v280 = vsub.f32 %v277, %v279
  %v281 = vmul.f32 %v280, 0.5
  %v282 = vld [vmem:[%s13] sm:$0xf]
  %v283 = vld [vmem:[%s13 + $0x4] sm:$0xf]
  %v284 = vld [vmem:[%s13 + $0x8] sm:$0xf]
  %v285 = vld [vmem:[%s13 + $0xc] sm:$0xf]
  %v286 = vld [vmem:[%s14] sm:$0x1]
  %v288 = vlaneseq
  %v289 = vshrl.u32 %v288, 7
  %v290 = vsub.s32 0, %v289
  %v291 = vrot.slane %v286, %v290
  %293 = vrot.lane.b32.xlu0 %v184, 64
  %v294 = vpop.permute.xlu0 %293
  %v299 = vunpack.c.l.b16 %v282
  %v300 = vunpack.c.l.b16 %v283
  %v301 = vunpack.c.l.b16 %v284
  %v302 = vunpack.c.l.b16 %v285
  %v303 = vpack.c.b16 %v300, %v299
  %v304 = vpack.c.b16 %v302, %v301
  %v308 = vsel %vm207, %v294, 0
  %310 = vmatprep.subr.bf16.mxu0 0
  %311 = vmatpush1.bf16.msra.mxu0 0
  %312 = vmatprep.subr.bf16.mxu0 0
  %313 = vmatpush1.bf16.msra.mxu0 0
  %314 = vmatprep.subr.bf16.mxu0 0
  %315 = vmatpush1.bf16.msra.mxu0 0
  %316 = vmatprep.subr.bf16.mxu0 0
  %317 = vmatpush1.bf16.msra.mxu0 0
  %318 = vmatprep.subr.bf16.mxu0 0
  %319 = vmatpush1.bf16.msra.mxu0 0
  %320 = vmatprep.subr.bf16.mxu0 0
  %321 = vmatpush1.bf16.msra.mxu0 0
  %322 = vmatprep.subr.bf16.mxu0 0
  %323 = vmatpush1.bf16.msra.mxu0 %v304
  %324 = vmatprep.subr.bf16.mxu0 0
  %325 = vmatpush1.bf16.msra.mxu0 %v303
  %326 = vmatprep.subr.bf16.mxu0 0
  %327 = vmatpush2.bf16.msra.mxu0 0
  %328 = vmatprep.subr.bf16.mxu0 0
  %329 = vmatpush2.bf16.msra.mxu0 0
  %330 = vmatprep.subr.bf16.mxu0 0
  %331 = vmatpush2.bf16.msra.mxu0 0
  %332 = vmatprep.subr.bf16.mxu0 0
  %333 = vmatpush2.bf16.msra.mxu0 0
  %334 = vmatprep.subr.bf16.mxu0 0
  %335 = vmatpush2.bf16.msra.mxu0 0
  %336 = vmatprep.subr.bf16.mxu0 0
  %337 = vmatpush2.bf16.msra.mxu0 0
  %338 = vmatprep.subr.bf16.mxu0 0
  %339 = vmatpush2.bf16.msra.mxu0 0
  %340 = vmatprep.subr.bf16.mxu0 0
  %341 = vmatpush2.bf16.msra.mxu0 0
  %342 = vmatprep.mubr.bf16.mxu0 0
  %343 = vmatmul.mubr.bf16.gmra.mxu0 %v308
  %v344 = vpop.f32.mrf.mxu0
  %v345 = vadd.f32 %v291, %v344
  %v346 = vpop.f32.mrf.mxu0
  %v347 = vpop.f32.mrf.mxu0
  %v348 = vpop.f32.mrf.mxu0
  %349 = vdwg.mxu0
  %vm350 = vcmask 31744
  %v351 = vsel %vm350, %v345, -inf
  %352 = vmax.xlane.f32.xlu0 %v351
  %v353 = vpop.xlane.xlu0 %352
  %v354 = vsub.f32 %v345, %v353
  %v355 = vmul.f32 %v354, 1.442695
  %v356 = vpow.pop %v355
  %v357 = vsel %vm350, %v356, 0.0
  %358 = vadd.xlane.f32.xlu0 %v357
  %v359 = vpop.xlane.xlu0 %358
  %v360 = vrcp.pop %v359
  %v361 = vmul.f32 %v356, %v360
  %v362 = vld [vmem:[%s5] sm:$0x1]
  %v363 = vmul.f32 %v362, 1.442695
  %v364 = vpow.pop %v363
  %v365 = vadd.f32 %v364, 1e-08
  %v366 = vlog2.pop %v365
  %v367 = vmul.f32 %v366, 0.6931472
  %v368 = vmul.f32 %v364, %v367
  %v370 = vlaneseq
  %v371 = vshrl.u32 %v370, 7
  %v372 = vsub.s32 0, %v371
  %v373 = vrot.slane %v364, %v372
  %v375 = vadd.f32 %v63, %v373
  %v376 = vsub.f32 %v375, 1.0
  %v377 = vadd.f32 %v376, 1.0
  %v378 = vrcp.pop %v377
  %v379 = vmul.f32 676.5204, %v378
  %v380 = vadd.f32 %v379, 1.0
  %v381 = vadd.f32 %v376, 2.0
  %v382 = vrcp.pop %v381
  %v383 = vmul.f32 -1259.1392, %v382
  %v384 = vadd.f32 %v380, %v383
  %v385 = vadd.f32 %v376, 3.0
  %v386 = vrcp.pop %v385
  %v387 = vmul.f32 771.3234, %v386
  %v388 = vadd.f32 %v384, %v387
  %v389 = vadd.f32 %v376, 4.0
  %v390 = vrcp.pop %v389
  %v391 = vmul.f32 -176.61504, %v390
  %v392 = vadd.f32 %v388, %v391
  %v393 = vadd.f32 %v376, 5.0
  %v394 = vrcp.pop %v393
  %v395 = vmul.f32 12.507343, %v394
  %v396 = vadd.f32 %v392, %v395
  %v397 = vadd.f32 %v376, 6.0
  %v398 = vrcp.pop %v397
  %v399 = vmul.f32 -0.1385711, %v398
  %v400 = vadd.f32 %v396, %v399
  %v401 = vadd.f32 %v376, 7.0
  %v402 = vrcp.pop %v401
  %v403 = vmul.f32 9.984369e-06, %v402
  %v404 = vadd.f32 %v400, %v403
  %v405 = vadd.f32 %v376, 8.0
  %v406 = vrcp.pop %v405
  %v407 = vmul.f32 1.5056327e-07, %v406
  %v408 = vadd.f32 %v404, %v407
  %v409 = vadd.f32 %v401, 0.5
  %v410 = vadd.f32 %v376, 0.5
  %v411 = vlog2.pop %v409
  %v412 = vmul.f32 %v411, 0.6931472
  %v413 = vmul.f32 %v410, %v412
  %v414 = vadd.f32 %v413, 0.9189385
  %v415 = vsub.f32 %v414, %v409
  %v416 = vlog2.pop %v408
  %v417 = vmul.f32 %v416, 0.6931472
  %v418 = vadd.f32 %v415, %v417
  %v419 = vsub.f32 %v364, 1.0
  %v420 = vadd.f32 %v419, 1.0
  %v421 = vrcp.pop %v420
  %v422 = vmul.f32 676.5204, %v421
  %v423 = vadd.f32 %v422, 1.0
  %v424 = vadd.f32 %v419, 2.0
  %v425 = vrcp.pop %v424
  %v426 = vmul.f32 -1259.1392, %v425
  %v427 = vadd.f32 %v423, %v426
  %v428 = vadd.f32 %v419, 3.0
  %v429 = vrcp.pop %v428
  %v430 = vmul.f32 771.3234, %v429
  %v431 = vadd.f32 %v427, %v430
  %v432 = vadd.f32 %v419, 4.0
  %v433 = vrcp.pop %v432
  %v434 = vmul.f32 -176.61504, %v433
  %v435 = vadd.f32 %v431, %v434
  %v436 = vadd.f32 %v419, 5.0
  %v437 = vrcp.pop %v436
  %v438 = vmul.f32 12.507343, %v437
  %v439 = vadd.f32 %v435, %v438
  %v440 = vadd.f32 %v419, 6.0
  %v441 = vrcp.pop %v440
  %v442 = vmul.f32 -0.1385711, %v441
  %v443 = vadd.f32 %v439, %v442
  %v444 = vadd.f32 %v419, 7.0
  %v445 = vrcp.pop %v444
  %v446 = vmul.f32 9.984369e-06, %v445
  %v447 = vadd.f32 %v443, %v446
  %v448 = vadd.f32 %v419, 8.0
  %v449 = vrcp.pop %v448
  %v450 = vmul.f32 1.5056327e-07, %v449
  %v451 = vadd.f32 %v447, %v450
  %v452 = vadd.f32 %v444, 0.5
  %v453 = vadd.f32 %v419, 0.5
  %v454 = vlog2.pop %v452
  %v455 = vmul.f32 %v454, 0.6931472
  %v456 = vmul.f32 %v453, %v455
  %v457 = vadd.f32 %v456, 0.9189385
  %v458 = vsub.f32 %v457, %v452
  %v459 = vlog2.pop %v451
  %v460 = vmul.f32 %v459, 0.6931472
  %v461 = vadd.f32 %v458, %v460
  %v463 = vlaneseq
  %v464 = vshrl.u32 %v463, 7
  %v465 = vsub.s32 0, %v464
  %v466 = vrot.slane %v461, %v465
  %v468 = vsub.f32 %v418, %v466
  %v469 = vsub.f32 %v64, 1.0
  %v470 = vadd.f32 %v469, 1.0
  %v471 = vrcp.pop %v470
  %v472 = vmul.f32 676.5204, %v471
  %v473 = vadd.f32 %v472, 1.0
  %v474 = vadd.f32 %v469, 2.0
  %v475 = vrcp.pop %v474
  %v476 = vmul.f32 -1259.1392, %v475
  %v477 = vadd.f32 %v473, %v476
  %v478 = vadd.f32 %v469, 3.0
  %v479 = vrcp.pop %v478
  %v480 = vmul.f32 771.3234, %v479
  %v481 = vadd.f32 %v477, %v480
  %v482 = vadd.f32 %v469, 4.0
  %v483 = vrcp.pop %v482
  %v484 = vmul.f32 -176.61504, %v483
  %v485 = vadd.f32 %v481, %v484
  %v486 = vadd.f32 %v469, 5.0
  %v487 = vrcp.pop %v486
  %v488 = vmul.f32 12.507343, %v487
  %v489 = vadd.f32 %v485, %v488
  %v490 = vadd.f32 %v469, 6.0
  %v491 = vrcp.pop %v490
  %v492 = vmul.f32 -0.1385711, %v491
  %v493 = vadd.f32 %v489, %v492
  %v494 = vadd.f32 %v469, 7.0
  %v495 = vrcp.pop %v494
  %v496 = vmul.f32 9.984369e-06, %v495
  %v497 = vadd.f32 %v493, %v496
  %v498 = vadd.f32 %v469, 8.0
  %v499 = vrcp.pop %v498
  %v500 = vmul.f32 1.5056327e-07, %v499
  %v501 = vadd.f32 %v497, %v500
  %v502 = vadd.f32 %v494, 0.5
  %v503 = vadd.f32 %v469, 0.5
  %v504 = vlog2.pop %v502
  %v505 = vmul.f32 %v504, 0.6931472
  %v506 = vmul.f32 %v503, %v505
  %v507 = vadd.f32 %v506, 0.9189385
  %v508 = vsub.f32 %v507, %v502
  %v509 = vlog2.pop %v501
  %v510 = vmul.f32 %v509, 0.6931472
  %v511 = vadd.f32 %v508, %v510
  %v512 = vsub.f32 %v468, %v511
  %vm513 = vcmp.lt.f32.partialorder %v63, 1e-08
  %v514 = vld [vmem:[%s8] sm:$0xff]
  %v515 = vld [vmem:[%s8 + $0x8] sm:$0xff]
  %v516 = vld [vmem:[%s8 + $0x10] sm:$0xff]
  %v517 = vld [vmem:[%s8 + $0x18] sm:$0xff]
  %v518 = vadd.f32 %v174, %v514
  %v519 = vadd.f32 %v174, %v515
  %v520 = vadd.f32 %v174, %v516
  %v521 = vadd.f32 %v174, %v517
  %v522 = vmax.f32 %v518, 0.0
  %v523 = vmax.f32 %v519, 0.0
  %v524 = vmax.f32 %v520, 0.0
  %v525 = vmax.f32 %v521, 0.0
  %v526 = vld [vmem:[%s9] sm:$0xf]
  %v527 = vld [vmem:[%s9 + $0x4] sm:$0xf]
  %v528 = vld [vmem:[%s9 + $0x8] sm:$0xf]
  %v529 = vld [vmem:[%s9 + $0xc] sm:$0xf]
  %v530 = vpack.c.bf16 %v523, %v522
  %v531 = vpack.c.bf16 %v525, %v524
  %v532 = vld [vmem:[%s10] sm:$0x1]
  %v534 = vlaneseq
  %v535 = vshrl.u32 %v534, 7
  %v536 = vsub.s32 0, %v535
  %v537 = vrot.slane %v532, %v536
  %v543 = vunpack.c.l.b16 %v526
  %v544 = vunpack.c.l.b16 %v527
  %v545 = vunpack.c.l.b16 %v528
  %v546 = vunpack.c.l.b16 %v529
  %v547 = vpack.c.b16 %v544, %v543
  %v548 = vpack.c.b16 %v546, %v545
  %v552 = vsel %vm207, %v530, 0
  %v555 = vsel %vm207, %v531, 0
  %557 = vmatprep.subr.bf16.mxu0 0
  %558 = vmatpush1.bf16.msra.mxu0 0
  %559 = vmatprep.subr.bf16.mxu0 0
  %560 = vmatpush1.bf16.msra.mxu0 0
  %561 = vmatprep.subr.bf16.mxu0 0
  %562 = vmatpush1.bf16.msra.mxu0 0
  %563 = vmatprep.subr.bf16.mxu0 0
  %564 = vmatpush1.bf16.msra.mxu0 0
  %565 = vmatprep.subr.bf16.mxu0 0
  %566 = vmatpush1.bf16.msra.mxu0 0
  %567 = vmatprep.subr.bf16.mxu0 0
  %568 = vmatpush1.bf16.msra.mxu0 0
  %569 = vmatprep.subr.bf16.mxu0 0
  %570 = vmatpush1.bf16.msra.mxu0 %v548
  %571 = vmatprep.subr.bf16.mxu0 0
  %572 = vmatpush1.bf16.msra.mxu0 %v547
  %573 = vmatprep.subr.bf16.mxu0 0
  %574 = vmatpush2.bf16.msra.mxu0 0
  %575 = vmatprep.subr.bf16.mxu0 0
  %576 = vmatpush2.bf16.msra.mxu0 0
  %577 = vmatprep.subr.bf16.mxu0 0
  %578 = vmatpush2.bf16.msra.mxu0 0
  %579 = vmatprep.subr.bf16.mxu0 0
  %580 = vmatpush2.bf16.msra.mxu0 0
  %581 = vmatprep.subr.bf16.mxu0 0
  %582 = vmatpush2.bf16.msra.mxu0 0
  %583 = vmatprep.subr.bf16.mxu0 0
  %584 = vmatpush2.bf16.msra.mxu0 0
  %585 = vmatprep.subr.bf16.mxu0 0
  %586 = vmatpush2.bf16.msra.mxu0 0
  %587 = vmatprep.subr.bf16.mxu0 0
  %588 = vmatpush2.bf16.msra.mxu0 0
  %589 = vmatprep.mubr.bf16.mxu0 0
  %590 = vmatmul.mubr.bf16.gmra.mxu0 %v552
  %v591 = vpop.f32.mrf.mxu0
  %v592 = vadd.f32 %v537, %v591
  %v593 = vpop.f32.mrf.mxu0
  %v594 = vpop.f32.mrf.mxu0
  %v595 = vadd.f32 %v537, %v594
  %v596 = vpop.f32.mrf.mxu0
  %597 = vmatprep.mubr.bf16.mxu0 0
  %598 = vmatmul.mubr.bf16.gmra.mxu0 %v555
  %v599 = vpop.f32.mrf.mxu0
  %v600 = vadd.f32 %v537, %v599
  %v601 = vpop.f32.mrf.mxu0
  %v602 = vpop.f32.mrf.mxu0
  %v603 = vadd.f32 %v537, %v602
  %v604 = vpop.f32.mrf.mxu0
  %605 = vdwg.mxu0
  %v606 = vmul.f32 %v592, 1.442695
  %v607 = vpow.pop %v606
  %v608 = vmul.f32 %v595, 1.442695
  %v609 = vpow.pop %v608
  %v610 = vmul.f32 %v600, 1.442695
  %v611 = vpow.pop %v610
  %v612 = vmul.f32 %v603, 1.442695
  %v613 = vpow.pop %v612
  %v614 = vrsqrt.pop %v607
  %v615 = vmul.f32 %v607, %v614
  %vm616 = vcmp.eq.f32.partialorder %v607, inf
  %v617 = vsel %vm616, %v607, %v615
  %vm618 = vcmp.eq.f32.partialorder %v607, 0.0
  %v619 = vand.u32 %v607, 2147483648
  %v620 = vsel %vm618, %v619, %v617
  %v621 = vrsqrt.pop %v609
  %v622 = vmul.f32 %v609, %v621
  %vm623 = vcmp.eq.f32.partialorder %v609, inf
  %v624 = vsel %vm623, %v609, %v622
  %vm625 = vcmp.eq.f32.partialorder %v609, 0.0
  %v626 = vand.u32 %v609, 2147483648
  %v627 = vsel %vm625, %v626, %v624
  %v628 = vrsqrt.pop %v611
  %v629 = vmul.f32 %v611, %v628
  %vm630 = vcmp.eq.f32.partialorder %v611, inf
  %v631 = vsel %vm630, %v611, %v629
  %vm632 = vcmp.eq.f32.partialorder %v611, 0.0
  %v633 = vand.u32 %v611, 2147483648
  %v634 = vsel %vm632, %v633, %v631
  %v635 = vrsqrt.pop %v613
  %v636 = vmul.f32 %v613, %v635
  %vm637 = vcmp.eq.f32.partialorder %v613, inf
  %v638 = vsel %vm637, %v613, %v636
  %vm639 = vcmp.eq.f32.partialorder %v613, 0.0
  %v640 = vand.u32 %v613, 2147483648
  %v641 = vsel %vm639, %v640, %v638
  %v642 = vld [vmem:[%s1] sm:$0xff]
  %v643 = vld [vmem:[%s1 + $0x8] sm:$0xff]
  %v644 = vld [vmem:[%s1 + $0x10] sm:$0xff]
  %v645 = vld [vmem:[%s1 + $0x18] sm:$0xff]
  %650 = vrot.lane.b32.xlu0 %v642, 8
  %v651 = vpop.permute.xlu0 %650
  %652 = vrot.lane.b32.xlu0 %v643, 8
  %v653 = vpop.permute.xlu0 %652
  %654 = vrot.lane.b32.xlu0 %v644, 8
  %v655 = vpop.permute.xlu0 %654
  %656 = vrot.lane.b32.xlu0 %v645, 8
  %v657 = vpop.permute.xlu0 %656
  %v662 = vmul.f32 %v620, %v651
  %v663 = vmul.f32 %v627, %v653
  %v664 = vmul.f32 %v634, %v655
  %v665 = vmul.f32 %v641, %v657
  %670 = vrot.lane.b32.xlu0 %v662, 120
  %v671 = vpop.permute.xlu0 %670
  %672 = vrot.lane.b32.xlu0 %v663, 120
  %v673 = vpop.permute.xlu0 %672
  %674 = vrot.lane.b32.xlu0 %v664, 120
  %v675 = vpop.permute.xlu0 %674
  %676 = vrot.lane.b32.xlu0 %v665, 120
  %v677 = vpop.permute.xlu0 %676
  %v682 = vadd.f32 %v592, %v671
  %v683 = vadd.f32 %v595, %v673
  %v684 = vadd.f32 %v600, %v675
  %v685 = vadd.f32 %v603, %v677
  %v686 = vmul.f32 %v592, %v592
  %v687 = vmul.f32 %v595, %v595
  %v688 = vmul.f32 %v600, %v600
  %v689 = vmul.f32 %v603, %v603
  %694 = vrot.lane.b32.xlu0 %v686, 8
  %v695 = vpop.permute.xlu0 %694
  %696 = vrot.lane.b32.xlu0 %v687, 8
  %v697 = vpop.permute.xlu0 %696
  %698 = vrot.lane.b32.xlu0 %v688, 8
  %v699 = vpop.permute.xlu0 %698
  %700 = vrot.lane.b32.xlu0 %v689, 8
  %v701 = vpop.permute.xlu0 %700
  %v706 = vadd.f32 %v607, %v695
  %v707 = vadd.f32 %v609, %v697
  %v708 = vadd.f32 %v611, %v699
  %v709 = vadd.f32 %v613, %v701
  %v710 = vsub.f32 %v706, 1.0
  %v711 = vsub.f32 %v707, 1.0
  %v712 = vsub.f32 %v708, 1.0
  %v713 = vsub.f32 %v709, 1.0
  %v714 = vsub.f32 %v710, %v592
  %v715 = vsub.f32 %v711, %v595
  %v716 = vsub.f32 %v712, %v600
  %v717 = vsub.f32 %v713, %v603
  %722 = vrot.lane.b32.xlu0 %v714, 120
  %v723 = vpop.permute.xlu0 %722
  %724 = vrot.lane.b32.xlu0 %v715, 120
  %v725 = vpop.permute.xlu0 %724
  %726 = vrot.lane.b32.xlu0 %v716, 120
  %v727 = vpop.permute.xlu0 %726
  %728 = vrot.lane.b32.xlu0 %v717, 120
  %v729 = vpop.permute.xlu0 %728
  %vm734 = vcmask 64512
  %v735 = vsel %vm734, %v723, 0.0
  %736 = vadd.xlane.f32.xlu0 %v735
  %v737 = vpop.xlane.xlu0 %736
  %v738 = vsel %vm734, %v725, 0.0
  %739 = vadd.xlane.f32.xlu0 %v738
  %v740 = vpop.xlane.xlu0 %739
  %v741 = vsel %vm734, %v727, 0.0
  %742 = vadd.xlane.f32.xlu0 %v741
  %v743 = vpop.xlane.xlu0 %742
  %v744 = vsel %vm734, %v729, 0.0
  %745 = vadd.xlane.f32.xlu0 %v744
  %v746 = vpop.xlane.xlu0 %745
  %v747 = vmul.f32 %v737, 0.5
  %v748 = vmul.f32 %v740, 0.5
  %v749 = vmul.f32 %v743, 0.5
  %v750 = vmul.f32 %v746, 0.5
  %v751 = vld [vmem:[%s15] sm:$0xf]
  %v752 = vpack.c.bf16 %v683, %v682
  %v753 = vpack.c.bf16 %v685, %v684
  %v754 = vld [vmem:[%s16] sm:$0xff]
  %v755 = vld [vmem:[%s16 + $0x8] sm:$0xff]
  %v756 = vld [vmem:[%s16 + $0x10] sm:$0xff]
  %v757 = vld [vmem:[%s16 + $0x18] sm:$0xff]
  %v759 = vsel %vm734, %v752, 0
  %v762 = vsel %vm734, %v753, 0
  %vm764 = vcmask 1043456
  %v766 = vsel %vm764, %v751, 0
  %768 = vmatprep.subr.bf16.mxu0 0
  %769 = vmatpush1.bf16.msra.mxu0 0
  %770 = vmatprep.subr.bf16.mxu0 0
  %771 = vmatpush1.bf16.msra.mxu0 0
  %772 = vmatprep.subr.bf16.mxu0 0
  %773 = vmatpush1.bf16.msra.mxu0 0
  %774 = vmatprep.subr.bf16.mxu0 0
  %775 = vmatpush1.bf16.msra.mxu0 0
  %776 = vmatprep.subr.bf16.mxu0 0
  %777 = vmatpush1.bf16.msra.mxu0 0
  %778 = vmatprep.subr.bf16.mxu0 0
  %779 = vmatpush1.bf16.msra.mxu0 0
  %780 = vmatprep.subr.bf16.mxu0 0
  %781 = vmatpush1.bf16.msra.mxu0 0
  %782 = vmatprep.subr.bf16.mxu0 0
  %783 = vmatpush1.bf16.msra.mxu0 %v766
  %784 = vmatprep.subr.bf16.mxu0 0
  %785 = vmatpush2.bf16.msra.mxu0 0
  %786 = vmatprep.subr.bf16.mxu0 0
  %787 = vmatpush2.bf16.msra.mxu0 0
  %788 = vmatprep.subr.bf16.mxu0 0
  %789 = vmatpush2.bf16.msra.mxu0 0
  %790 = vmatprep.subr.bf16.mxu0 0
  %791 = vmatpush2.bf16.msra.mxu0 0
  %792 = vmatprep.subr.bf16.mxu0 0
  %793 = vmatpush2.bf16.msra.mxu0 0
  %794 = vmatprep.subr.bf16.mxu0 0
  %795 = vmatpush2.bf16.msra.mxu0 0
  %796 = vmatprep.subr.bf16.mxu0 0
  %797 = vmatpush2.bf16.msra.mxu0 0
  %798 = vmatprep.subr.bf16.mxu0 0
  %799 = vmatpush2.bf16.msra.mxu0 0
  %800 = vmatprep.mubr.bf16.mxu0 0
  %801 = vmatmul.mubr.bf16.gmra.mxu0 %v759
  %v802 = vpop.f32.mrf.mxu0
  %v803 = vadd.f32 %v754, %v802
  %v804 = vpop.f32.mrf.mxu0
  %v805 = vpop.f32.mrf.mxu0
  %v806 = vadd.f32 %v755, %v805
  %v807 = vpop.f32.mrf.mxu0
  %808 = vmatprep.mubr.bf16.mxu0 0
  %809 = vmatmul.mubr.bf16.gmra.mxu0 %v762
  %v810 = vpop.f32.mrf.mxu0
  %v811 = vadd.f32 %v756, %v810
  %v812 = vpop.f32.mrf.mxu0
  %v813 = vpop.f32.mrf.mxu0
  %v814 = vadd.f32 %v757, %v813
  %v815 = vpop.f32.mrf.mxu0
  %816 = vdwg.mxu0
  %v817 = vmax.f32 %v803, 0.0
  %v818 = vmax.f32 %v806, 0.0
  %v819 = vmax.f32 %v811, 0.0
  %v820 = vmax.f32 %v814, 0.0
  %v821 = vld [vmem:[%s17] sm:$0xff]
  %v822 = vld [vmem:[%s17 + $0x8] sm:$0xff]
  %v823 = vld [vmem:[%s17 + $0x10] sm:$0xff]
  %v824 = vld [vmem:[%s17 + $0x18] sm:$0xff]
  %v825 = vpack.c.bf16 %v818, %v817
  %v826 = vpack.c.bf16 %v820, %v819
  %v827 = vld [vmem:[%s18] sm:$0x3]
  %v829 = vlaneseq
  %v830 = vshrl.u32 %v829, 7
  %v831 = vsub.s32 0, %v830
  %v832 = vrot.slane %v827, %v831
  %v833 = vlaneseq
  %v834 = vshrl.u32 %v833, 7
  %v835 = vsub.s32 1, %v834
  %v836 = vrot.slane %v827, %v835
  %v843 = vunpack.c.l.b16 %v821
  %v844 = vunpack.c.h.b16 %v821
  %v845 = vunpack.c.l.b16 %v822
  %v846 = vunpack.c.h.b16 %v822
  %v847 = vunpack.c.l.b16 %v823
  %v848 = vunpack.c.h.b16 %v823
  %v849 = vunpack.c.l.b16 %v824
  %v850 = vunpack.c.h.b16 %v824
  %v851 = vpack.c.b16 %v845, %v843
  %v852 = vpack.c.b16 %v846, %v844
  %v853 = vpack.c.b16 %v849, %v847
  %v854 = vpack.c.b16 %v850, %v848
  %v860 = vsel %vm207, %v825, 0
  %v863 = vsel %vm207, %v826, 0
  %865 = vmatprep.subr.bf16.mxu0 0
  %866 = vmatpush1.bf16.msra.mxu0 0
  %867 = vmatprep.subr.bf16.mxu0 0
  %868 = vmatpush1.bf16.msra.mxu0 0
  %869 = vmatprep.subr.bf16.mxu0 0
  %870 = vmatpush1.bf16.msra.mxu0 0
  %871 = vmatprep.subr.bf16.mxu0 0
  %872 = vmatpush1.bf16.msra.mxu0 0
  %873 = vmatprep.subr.bf16.mxu0 0
  %874 = vmatpush1.bf16.msra.mxu0 0
  %875 = vmatprep.subr.bf16.mxu0 0
  %876 = vmatpush1.bf16.msra.mxu0 0
  %877 = vmatprep.subr.bf16.mxu0 %v854
  %878 = vmatpush1.bf16.msra.mxu0 %v853
  %879 = vmatprep.subr.bf16.mxu0 %v852
  %880 = vmatpush1.bf16.msra.mxu0 %v851
  %881 = vmatprep.subr.bf16.mxu0 0
  %882 = vmatpush2.bf16.msra.mxu0 0
  %883 = vmatprep.subr.bf16.mxu0 0
  %884 = vmatpush2.bf16.msra.mxu0 0
  %885 = vmatprep.subr.bf16.mxu0 0
  %886 = vmatpush2.bf16.msra.mxu0 0
  %887 = vmatprep.subr.bf16.mxu0 0
  %888 = vmatpush2.bf16.msra.mxu0 0
  %889 = vmatprep.subr.bf16.mxu0 0
  %890 = vmatpush2.bf16.msra.mxu0 0
  %891 = vmatprep.subr.bf16.mxu0 0
  %892 = vmatpush2.bf16.msra.mxu0 0
  %893 = vmatprep.subr.bf16.mxu0 0
  %894 = vmatpush2.bf16.msra.mxu0 0
  %895 = vmatprep.subr.bf16.mxu0 0
  %896 = vmatpush2.bf16.msra.mxu0 0
  %897 = vmatprep.mubr.bf16.mxu0 0
  %898 = vmatmul.mubr.bf16.gmra.mxu0 %v860
  %v899 = vpop.f32.mrf.mxu0
  %v900 = vadd.f32 %v832, %v899
  %v901 = vpop.f32.mrf.mxu0
  %v902 = vadd.f32 %v836, %v901
  %v903 = vpop.f32.mrf.mxu0
  %v904 = vadd.f32 %v832, %v903
  %v905 = vpop.f32.mrf.mxu0
  %v906 = vadd.f32 %v836, %v905
  %907 = vmatprep.mubr.bf16.mxu0 0
  %908 = vmatmul.mubr.bf16.gmra.mxu0 %v863
  %v909 = vpop.f32.mrf.mxu0
  %v910 = vadd.f32 %v832, %v909
  %v911 = vpop.f32.mrf.mxu0
  %v912 = vadd.f32 %v836, %v911
  %v913 = vpop.f32.mrf.mxu0
  %v914 = vadd.f32 %v832, %v913
  %v915 = vpop.f32.mrf.mxu0
  %v916 = vadd.f32 %v836, %v915
  %917 = vdwg.mxu0
  %918 = vmax.xlane.f32.xlu0 %v900
  %v919 = vpop.xlane.xlu0 %918
  %920 = vmax.xlane.f32.xlu0 %v904
  %v921 = vpop.xlane.xlu0 %920
  %922 = vmax.xlane.f32.xlu0 %v910
  %v923 = vpop.xlane.xlu0 %922
  %924 = vmax.xlane.f32.xlu0 %v914
  %v925 = vpop.xlane.xlu0 %924
  %v926 = vsub.f32 %v900, %v919
  %v927 = vsub.f32 %v904, %v921
  %v928 = vsub.f32 %v910, %v923
  %v929 = vsub.f32 %v914, %v925
  %v930 = vmul.f32 %v926, 1.442695
  %v931 = vpow.pop %v930
  %v932 = vmul.f32 %v927, 1.442695
  %v933 = vpow.pop %v932
  %v934 = vmul.f32 %v928, 1.442695
  %v935 = vpow.pop %v934
  %v936 = vmul.f32 %v929, 1.442695
  %v937 = vpow.pop %v936
  %938 = vadd.xlane.f32.xlu0 %v931
  %v939 = vpop.xlane.xlu0 %938
  %940 = vadd.xlane.f32.xlu0 %v933
  %v941 = vpop.xlane.xlu0 %940
  %942 = vadd.xlane.f32.xlu0 %v935
  %v943 = vpop.xlane.xlu0 %942
  %944 = vadd.xlane.f32.xlu0 %v937
  %v945 = vpop.xlane.xlu0 %944
  %v946 = vrcp.pop %v939
  %v947 = vrcp.pop %v941
  %v948 = vrcp.pop %v943
  %v949 = vrcp.pop %v945
  %v950 = vmul.f32 %v931, %v946
  %v951 = vmul.f32 %v933, %v947
  %v952 = vmul.f32 %v935, %v948
  %v953 = vmul.f32 %v937, %v949
  %v954 = vld [vmem:[%s2] sm:$0xff]
  %v955 = vld [vmem:[%s2 + $0x8] sm:$0xff]
  %v956 = vld [vmem:[%s2 + $0x10] sm:$0xff]
  %v957 = vld [vmem:[%s2 + $0x18] sm:$0xff]
  %959 = vrot.lane.b32.xlu0 %v954, 1
  %v960 = vpop.permute.xlu0 %959
  %v962 = vmul.f32 %v259, %v960
  %964 = vrot.lane.b32.xlu0 %v962, 127
  %v965 = vpop.permute.xlu0 %964
  %v967 = vadd.f32 %v246, %v965
  %v968 = vmul.f32 %v967, 1.442695
  %v969 = vpow.pop %v968
  %971 = vset.pattern.permute.xlu0 0
  %972 = vperm.xlu0 %971, %v969
  %v973 = vpop.permute.xlu0 %972
  %v975 = vmul.f32 %v973, %v950
  %v976 = vsub.f32 0.0, %v902
  %v977 = vmax.f32 %v976, 0.0
  %v978 = vand.u32 2147483647, %v976
  %v979 = vsub.f32 0.0, %v978
  %v980 = vmul.f32 %v979, 1.442695
  %v981 = vpow.pop %v980
  %v982 = vadd.f32 %v981, 1.0
  %v983 = vlog2.pop %v982
  %v984 = vmul.f32 %v983, 0.6931472
  %v985 = vadd.f32 %v977, %v984
  %v986 = vadd.f32 %v373, %v975
  %v987 = vadd.f32 %v986, 1e-08
  %v988 = vlog2.pop %v987
  %v989 = vmul.f32 %v988, 0.6931472
  %v990 = vmul.f32 %v373, %v989
  %v992 = vlaneseq
  %v993 = vshrl.u32 %v992, 7
  %v994 = vsub.s32 0, %v993
  %v995 = vrot.slane %v368, %v994
  %v997 = vsub.f32 %v995, %v990
  %v998 = vadd.f32 %v976, %v997
  %v999 = vmax.f32 %v998, 0.0
  %v1000 = vand.u32 2147483647, %v998
  %v1001 = vsub.f32 0.0, %v1000
  %v1002 = vmul.f32 %v1001, 1.442695
  %v1003 = vpow.pop %v1002
  %v1004 = vadd.f32 %v1003, 1.0
  %v1005 = vlog2.pop %v1004
  %v1006 = vmul.f32 %v1005, 0.6931472
  %v1007 = vadd.f32 %v999, %v1006
  %v1008 = vsub.f32 %v1007, %v985
  %v1009 = vsub.f32 %v976, %v985
  %v1010 = vadd.f32 %v1009, %v997
  %v1011 = vadd.f32 %v975, 1e-08
  %v1012 = vlog2.pop %v1011
  %v1013 = vmul.f32 %v1012, 0.6931472
  %v1014 = vmul.f32 %v63, %v1013
  %v1015 = vadd.f32 %v1010, %v1014
  %v1016 = vmul.f32 %v63, %v989
  %v1017 = vsub.f32 %v1015, %v1016
  %v1018 = vadd.f32 %v1017, %v512
  %v1019 = vsel %vm513, %v1008, %v1018
  %1020 = vadd.xlane.f32.xlu0 %v1019
  %v1021 = vpop.xlane.xlu0 %1020
  %v1022 = vsub.f32 0.0, %v1021
  %v1023 = vmul.f32 %v361, %v1022
  %v1024 = vadd.f32 %v1023, 0.0
  %v1025 = vadd.f32 %v747, %v281
  %1027 = vrot.lane.b32.xlu0 %v1025, 127
  %v1028 = vpop.permute.xlu0 %1027
  %v1030 = vmul.f32 %v361, %v1028
  %v1031 = vadd.f32 %v1030, 0.0
  %1033 = vrot.lane.b32.xlu0 %v955, 1
  %v1034 = vpop.permute.xlu0 %1033
  %v1036 = vmul.f32 %v259, %v1034
  %1038 = vrot.lane.b32.xlu0 %v1036, 127
  %v1039 = vpop.permute.xlu0 %1038
  %v1041 = vadd.f32 %v246, %v1039
  %v1042 = vmul.f32 %v1041, 1.442695
  %v1043 = vpow.pop %v1042
  %1045 = vset.pattern.permute.xlu0 0
  %1046 = vperm.xlu0 %1045, %v1043
  %v1047 = vpop.permute.xlu0 %1046
  %v1049 = vmul.f32 %v1047, %v951
  %v1050 = vsub.f32 0.0, %v906
  %v1051 = vmax.f32 %v1050, 0.0
  %v1052 = vand.u32 2147483647, %v1050
  %v1053 = vsub.f32 0.0, %v1052
  %v1054 = vmul.f32 %v1053, 1.442695
  %v1055 = vpow.pop %v1054
  %v1056 = vadd.f32 %v1055, 1.0
  %v1057 = vlog2.pop %v1056
  %v1058 = vmul.f32 %v1057, 0.6931472
  %v1059 = vadd.f32 %v1051, %v1058
  %v1060 = vadd.f32 %v373, %v1049
  %v1061 = vadd.f32 %v1060, 1e-08
  %v1062 = vlog2.pop %v1061
  %v1063 = vmul.f32 %v1062, 0.6931472
  %v1064 = vmul.f32 %v373, %v1063
  %v1065 = vsub.f32 %v995, %v1064
  %v1066 = vadd.f32 %v1050, %v1065
  %v1067 = vmax.f32 %v1066, 0.0
  %v1068 = vand.u32 2147483647, %v1066
  %v1069 = vsub.f32 0.0, %v1068
  %v1070 = vmul.f32 %v1069, 1.442695
  %v1071 = vpow.pop %v1070
  %v1072 = vadd.f32 %v1071, 1.0
  %v1073 = vlog2.pop %v1072
  %v1074 = vmul.f32 %v1073, 0.6931472
  %v1075 = vadd.f32 %v1067, %v1074
  %v1076 = vsub.f32 %v1075, %v1059
  %v1077 = vsub.f32 %v1050, %v1059
  %v1078 = vadd.f32 %v1077, %v1065
  %v1079 = vadd.f32 %v1049, 1e-08
  %v1080 = vlog2.pop %v1079
  %v1081 = vmul.f32 %v1080, 0.6931472
  %v1082 = vmul.f32 %v63, %v1081
  %v1083 = vadd.f32 %v1078, %v1082
  %v1084 = vmul.f32 %v63, %v1063
  %v1085 = vsub.f32 %v1083, %v1084
  %v1086 = vadd.f32 %v1085, %v512
  %v1087 = vsel %vm513, %v1076, %v1086
  %1088 = vadd.xlane.f32.xlu0 %v1087
  %v1089 = vpop.xlane.xlu0 %1088
  %v1090 = vsub.f32 0.0, %v1089
  %v1091 = vmul.f32 %v361, %v1090
  %1093 = vrot.lane.b32.xlu0 %v1091, 127
  %v1094 = vpop.permute.xlu0 %1093
  %v1096 = vadd.f32 %v1024, %v1094
  %v1097 = vadd.f32 %v748, %v281
  %v1098 = vmul.f32 %v361, %v1097
  %1100 = vrot.lane.b32.xlu0 %v1098, 127
  %v1101 = vpop.permute.xlu0 %1100
  %v1103 = vadd.f32 %v1031, %v1101
  %1105 = vrot.lane.b32.xlu0 %v956, 1
  %v1106 = vpop.permute.xlu0 %1105
  %v1108 = vmul.f32 %v259, %v1106
  %1110 = vrot.lane.b32.xlu0 %v1108, 127
  %v1111 = vpop.permute.xlu0 %1110
  %v1113 = vadd.f32 %v246, %v1111
  %v1114 = vmul.f32 %v1113, 1.442695
  %v1115 = vpow.pop %v1114
  %1117 = vset.pattern.permute.xlu0 0
  %1118 = vperm.xlu0 %1117, %v1115
  %v1119 = vpop.permute.xlu0 %1118
  %v1121 = vmul.f32 %v1119, %v952
  %v1122 = vsub.f32 0.0, %v912
  %v1123 = vmax.f32 %v1122, 0.0
  %v1124 = vand.u32 2147483647, %v1122
  %v1125 = vsub.f32 0.0, %v1124
  %v1126 = vmul.f32 %v1125, 1.442695
  %v1127 = vpow.pop %v1126
  %v1128 = vadd.f32 %v1127, 1.0
  %v1129 = vlog2.pop %v1128
  %v1130 = vmul.f32 %v1129, 0.6931472
  %v1131 = vadd.f32 %v1123, %v1130
  %v1132 = vadd.f32 %v373, %v1121
  %v1133 = vadd.f32 %v1132, 1e-08
  %v1134 = vlog2.pop %v1133
  %v1135 = vmul.f32 %v1134, 0.6931472
  %v1136 = vmul.f32 %v373, %v1135
  %v1137 = vsub.f32 %v995, %v1136
  %v1138 = vadd.f32 %v1122, %v1137
  %v1139 = vmax.f32 %v1138, 0.0
  %v1140 = vand.u32 2147483647, %v1138
  %v1141 = vsub.f32 0.0, %v1140
  %v1142 = vmul.f32 %v1141, 1.442695
  %v1143 = vpow.pop %v1142
  %v1144 = vadd.f32 %v1143, 1.0
  %v1145 = vlog2.pop %v1144
  %v1146 = vmul.f32 %v1145, 0.6931472
  %v1147 = vadd.f32 %v1139, %v1146
  %v1148 = vsub.f32 %v1147, %v1131
  %v1149 = vsub.f32 %v1122, %v1131
  %v1150 = vadd.f32 %v1149, %v1137
  %v1151 = vadd.f32 %v1121, 1e-08
  %v1152 = vlog2.pop %v1151
  %v1153 = vmul.f32 %v1152, 0.6931472
  %v1154 = vmul.f32 %v63, %v1153
  %v1155 = vadd.f32 %v1150, %v1154
  %v1156 = vmul.f32 %v63, %v1135
  %v1157 = vsub.f32 %v1155, %v1156
  %v1158 = vadd.f32 %v1157, %v512
  %v1159 = vsel %vm513, %v1148, %v1158
  %1160 = vadd.xlane.f32.xlu0 %v1159
  %v1161 = vpop.xlane.xlu0 %1160
  %v1162 = vsub.f32 0.0, %v1161
  %v1163 = vmul.f32 %v361, %v1162
  %1165 = vrot.lane.b32.xlu0 %v1163, 126
  %v1166 = vpop.permute.xlu0 %1165
  %v1168 = vadd.f32 %v1096, %v1166
  %v1169 = vadd.f32 %v749, %v281
  %1171 = vrot.lane.b32.xlu0 %v1169, 1
  %v1172 = vpop.permute.xlu0 %1171
  %v1174 = vmul.f32 %v361, %v1172
  %1176 = vrot.lane.b32.xlu0 %v1174, 126
  %v1177 = vpop.permute.xlu0 %1176
  %v1179 = vadd.f32 %v1103, %v1177
  %1181 = vrot.lane.b32.xlu0 %v957, 1
  %v1182 = vpop.permute.xlu0 %1181
  %v1184 = vmul.f32 %v259, %v1182
  %1186 = vrot.lane.b32.xlu0 %v1184, 127
  %v1187 = vpop.permute.xlu0 %1186
  %v1189 = vadd.f32 %v246, %v1187
  %v1190 = vmul.f32 %v1189, 1.442695
  %v1191 = vpow.pop %v1190
  %1193 = vset.pattern.permute.xlu0 0
  %1194 = vperm.xlu0 %1193, %v1191
  %v1195 = vpop.permute.xlu0 %1194
  %v1197 = vmul.f32 %v1195, %v953
  %v1198 = vsub.f32 0.0, %v916
  %v1199 = vmax.f32 %v1198, 0.0
  %v1200 = vand.u32 2147483647, %v1198
  %v1201 = vsub.f32 0.0, %v1200
  %v1202 = vmul.f32 %v1201, 1.442695
  %v1203 = vpow.pop %v1202
  %v1204 = vadd.f32 %v1203, 1.0
  %v1205 = vlog2.pop %v1204
  %v1206 = vmul.f32 %v1205, 0.6931472
  %v1207 = vadd.f32 %v1199, %v1206
  %v1208 = vadd.f32 %v373, %v1197
  %v1209 = vadd.f32 %v1208, 1e-08
  %v1210 = vlog2.pop %v1209
  %v1211 = vmul.f32 %v1210, 0.6931472
  %v1212 = vmul.f32 %v373, %v1211
  %v1213 = vsub.f32 %v995, %v1212
  %v1214 = vadd.f32 %v1198, %v1213
  %v1215 = vmax.f32 %v1214, 0.0
  %v1216 = vand.u32 2147483647, %v1214
  %v1217 = vsub.f32 0.0, %v1216
  %v1218 = vmul.f32 %v1217, 1.442695
  %v1219 = vpow.pop %v1218
  %v1220 = vadd.f32 %v1219, 1.0
  %v1221 = vlog2.pop %v1220
  %v1222 = vmul.f32 %v1221, 0.6931472
  %v1223 = vadd.f32 %v1215, %v1222
  %v1224 = vsub.f32 %v1223, %v1207
  %v1225 = vsub.f32 %v1198, %v1207
  %v1226 = vadd.f32 %v1225, %v1213
  %v1227 = vadd.f32 %v1197, 1e-08
  %v1228 = vlog2.pop %v1227
  %v1229 = vmul.f32 %v1228, 0.6931472
  %v1230 = vmul.f32 %v63, %v1229
  %v1231 = vadd.f32 %v1226, %v1230
  %v1232 = vmul.f32 %v63, %v1211
  %v1233 = vsub.f32 %v1231, %v1232
  %v1234 = vadd.f32 %v1233, %v512
  %v1235 = vsel %vm513, %v1224, %v1234
  %1236 = vadd.xlane.f32.xlu0 %v1235
  %v1237 = vpop.xlane.xlu0 %1236
  %v1238 = vsub.f32 0.0, %v1237
  %v1239 = vmul.f32 %v361, %v1238
  %1241 = vrot.lane.b32.xlu0 %v1239, 125
  %v1242 = vpop.permute.xlu0 %1241
  %v1244 = vadd.f32 %v1168, %v1242
  %v1245 = vadd.f32 %v750, %v281
  %1247 = vrot.lane.b32.xlu0 %v1245, 2
  %v1248 = vpop.permute.xlu0 %1247
  %v1250 = vmul.f32 %v361, %v1248
  %1252 = vrot.lane.b32.xlu0 %v1250, 125
  %v1253 = vpop.permute.xlu0 %1252
  %v1255 = vadd.f32 %v1179, %v1253
  %v1256 = vmax.f32 %v361, 1e-07
  %v1257 = vlog2.pop %v1256
  %v1258 = vmul.f32 %v1257, 0.6931472
  %v1259 = vadd.f32 %v1258, 1.3862944
  %v1260 = vmul.f32 %v361, %v1259
  %v1261 = vsel %vm350, %v1260, 0.0
  %1262 = vadd.xlane.f32.xlu0 %v1261
  %v1263 = vpop.xlane.xlu0 %1262
  %v1264 = vadd.f32 %v1255, %v1263
  %v1265 = vlaneseq
  %v1266 = vand.u32 %v1265, 127
  %vm1267 = vcmp.eq.s32.totalorder %v1266, 0
  %1269 = vset.pattern.permute.xlu0 0
  %1270 = vperm.xlu0 %1269, %v1244
  %v1271 = vpop.permute.xlu0 %1270
  %v1273 = vsel %vm1267, %v1271, 0.0
  %vm1274 = vcmp.eq.s32.totalorder %v1266, 1
  %1276 = vset.pattern.permute.xlu0 0
  %1277 = vperm.xlu0 %1276, %v1264
  %v1278 = vpop.permute.xlu0 %1277
  %v1280 = vsel %vm1274, %v1278, 0.0
  %v1281 = vadd.f32 %v1273, %v1280
  %1282 = vst [vmem:[%s19] sm:$0xff] %v1281
  // Predicated region
  $region78: #{vaec_forward.1} parent=0 // pred_check
    _
  $region79: #{vaec_forward.1} parent=0 // pred_check_branch
    %1284 = sbr.rel (0) target = $region81
  $region80: #{vaec_forward.1} parent=0 // pred_region
    _
  $region81: #{vaec_forward.1} parent=0 // pred_fallthru
    _
  // Predicated region
  $region82: #{vaec_forward.1} parent=0 // pred_check
    _
  $region83: #{vaec_forward.1} parent=0 // pred_check_branch
    %1286 = sbr.rel (0) target = $region85
  $region84: #{vaec_forward.1} parent=0 // pred_region
    _
  $region85: #{vaec_forward.1} parent=0 // pred_fallthru
    _

</llo_original>
